<compile_context>
chip_gen: v5e
topology: v5e:2x2
jax: 0.10.0
libtpu: 0.0.40
codegen_flags: <defaults>
</compile_context>

<pallas_src>
import functools

import jax
import jax.numpy as jnp
from jax import lax
from jax.experimental import pallas as pl
from jax.experimental.pallas import tpu as pltpu

NUM_LAYERS = 2
HIDDEN = 32
KERNEL_SIZE = 3
LN_EPS = 1e-5  # PyTorch LayerNorm default eps

_MM_DTYPE = jnp.bfloat16                    # MXU-native matmul input dtype
_VMEM_LIMIT_BYTES = 32 * 1024 * 1024        # explicit; safe on v5e/v6e/v7x
_VMEM_ROW_BUDGET_BYTES = 20 * 1024 * 1024   # activation working-set per step


def _layernorm(x, gamma, beta):
    mean = jnp.mean(x, axis=-1, keepdims=True)
    var = jnp.mean((x - mean) ** 2, axis=-1, keepdims=True)  # biased, like PyTorch
    return (x - mean) * lax.rsqrt(var + LN_EPS) * gamma + beta


def _vec(ref, l):
    # row l of an (L, H) param ref as a (1, H) array for broadcasting
    return ref[l][None, :]


def stack_gated_cnn_kernel(x_ref, w12_ref, ln1g_ref, ln1b_ref,
                           lin1w_ref, lin1b_ref, lin2w_ref, lin2b_ref,
                           ln2g_ref, ln2b_ref, o_ref,
                           *, num_layers, kernel_size, seq_len, fused_conv):
    pad = (kernel_size - 1) // 2
    x = x_ref[...].astype(jnp.float32)            # (R, H), rows ordered (b, s)
    R, H = x.shape

    # Per-tap validity masks for Conv1d 'same' zero padding, kept as (R, 1)
    # and broadcast at the use sites.  Rows are ordered (b, s) and a block
    # always contains whole sequences, so the same mask also zeroes rows the
    # flattened roll would pull across a sequence / block boundary.
    srow = lax.broadcasted_iota(jnp.int32, (R, 1), 0) % seq_len
    masks = {}
    for j in range(kernel_size):
        d = j - pad
        if d != 0:
            masks[d] = ((srow + d) >= 0) & ((srow + d) < seq_len)

    def tap(d):
        if d == 0:
            return x
        shifted = pltpu.roll(x, shift=(-d) % R, axis=0)   # row r -> x[r + d]
        return jnp.where(masks[d], shifted, 0.0)

    for l in range(num_layers):
        # --- GatedCNN: cnn2(x) * sigmoid(cnn1(x)), both convs fused on the
        # output dim.  bf16 operands, f32 accumulation. ---------------------
        w_l = w12_ref[l]
        if fused_conv:
            # H >= 128: one (R, K*H) @ (K*H, 2H) MXU dot.
            taps = [tap(j - pad).astype(w12_ref.dtype) for j in range(kernel_size)]
            xs_stacked = jnp.concatenate(taps, axis=1)            # (R, K*H)
            fused = jnp.dot(xs_stacked, w_l,
                            preferred_element_type=jnp.float32)   # (R, 2H)
        else:
            # H < 128: K accumulating (R,H) @ (H,2H) dots, no lane concat.
            fused = jnp.zeros((R, 2 * H), jnp.float32)
            for j in range(kernel_size):
                fused = fused + jnp.dot(tap(j - pad).astype(w12_ref.dtype),
                                        w_l[j],
                                        preferred_element_type=jnp.float32)
        h1 = fused[:, :H]                                         # cnn1(x)
        h2 = fused[:, H:]                                         # cnn2(x)
        gated = h2 * jax.nn.sigmoid(h1)

        # residual + LayerNorm (f32 VPU math)
        x = _layernorm(gated + x, _vec(ln1g_ref, l), _vec(ln1b_ref, l))

        # feed-forward: relu(Linear1(x)) -> Linear2 -> residual -> LayerNorm
        l1 = jnp.maximum(
            jnp.dot(x.astype(lin1w_ref.dtype), lin1w_ref[l],
                    preferred_element_type=jnp.float32) + _vec(lin1b_ref, l),
            0.0)
        l2 = (jnp.dot(l1.astype(lin2w_ref.dtype), lin2w_ref[l],
                      preferred_element_type=jnp.float32) + _vec(lin2b_ref, l))
        x = _layernorm(x + l2, _vec(ln2g_ref, l), _vec(ln2b_ref, l))

    o_ref[...] = x.astype(o_ref.dtype)


def _choose_seqs_per_block(batch, seq_len, hidden):
    """Whole sequences per row block: largest that fits the VMEM row budget,
    keeps the (8,128) sublane constraint, and leaves >= 2 grid steps so both
    v7x TensorCores get work."""
    # ~12 f32 copies of a (rows, H) block live per layer step (x, taps, fused,
    # l1/l2, LN temporaries) plus double-buffered input/output blocks.
    rows_budget = max(seq_len, _VMEM_ROW_BUDGET_BYTES // max(1, hidden * 4 * 12))
    total_rows = batch * seq_len
    for d in range(batch, 0, -1):
        if batch % d:
            continue
        rows = d * seq_len
        if rows % 8 != 0 and rows != total_rows:
            continue                      # block sublane dim must divide by 8
        steps = batch // d
        if rows <= rows_budget and (steps >= 2 or batch == 1):
            return d
    return 1 if (seq_len % 8 == 0) else batch


def stack_gated_cnn(x, params, *, use_bf16_matmul=True):
    """x: (B, S, H).  params layout: see __main__."""
    w1, w2, ln1g, ln1b, lin1w, lin1b, lin2w, lin2b, ln2g, ln2b = params
    B, S, H = x.shape
    L, K = w1.shape[0], w1.shape[1]

    # Fuse the two gate convs along the output dim: (L,K,H,H)x2 -> (L,K,H,2H).
    # NOTE: real PyTorch Conv1d weights are (out, in, k); transpose to
    # (k, in, out) per layer before building w1/w2 when loading checkpoints.
    fused_conv = H >= 128
    w12 = jnp.concatenate([w1, w2], axis=-1)              # (L, K, H, 2H)
    if fused_conv:
        w12 = w12.reshape(L, K * H, 2 * H)
    mm_dtype = _MM_DTYPE if use_bf16_matmul else x.dtype
    w12 = w12.astype(mm_dtype)
    lin1w_c = lin1w.astype(mm_dtype)
    lin2w_c = lin2w.astype(mm_dtype)

    x_flat = x.reshape(B * S, H)
    rows_total = B * S

    seqs_per_block = _choose_seqs_per_block(B, S, H)
    rows_per_block = seqs_per_block * S
    grid = (rows_total // rows_per_block,)

    weights = (w12, ln1g, ln1b, lin1w_c, lin1b, lin2w_c, lin2b, ln2g, ln2b)

    def resident_spec(a):
        # full array, constant index_map -> VMEM-resident across grid steps
        n = a.ndim
        return pl.BlockSpec(a.shape, lambda i, n=n: (0,) * n)

    kernel = functools.partial(stack_gated_cnn_kernel, num_layers=L,
                               kernel_size=K, seq_len=S, fused_conv=fused_conv)

    flops = 2 * rows_total * L * (K * H * 2 * H + 2 * H * H)
    bytes_accessed = (2 * rows_total * H * x.dtype.itemsize
                      + sum(int(w.size * w.dtype.itemsize) for w in weights))
    cost = pl.CostEstimate(flops=int(flops),
                           transcendentals=int(rows_total * L * H),
                           bytes_accessed=int(bytes_accessed))

    # TODO(synk): if the activation DMA is still exposed at production shapes,
    # add pipeline_mode=pl.Buffered(3) on the x_flat BlockSpec.
    out_flat = pl.pallas_call(
        kernel,
        out_shape=jax.ShapeDtypeStruct((rows_total, H), x.dtype),
        grid_spec=pltpu.PrefetchScalarGridSpec(
            num_scalar_prefetch=0,
            grid=grid,
            in_specs=[pl.BlockSpec((rows_per_block, H), lambda i: (i, 0))]
                     + [resident_spec(a) for a in weights],
            out_specs=pl.BlockSpec((rows_per_block, H), lambda i: (i, 0))),
        compiler_params=pltpu.CompilerParams(
            dimension_semantics=("parallel",),
            vmem_limit_bytes=_VMEM_LIMIT_BYTES),
        cost_estimate=cost,
    )(x_flat, *weights)
    return out_flat.reshape(B, S, H)


# ---------------- pure-JAX reference (same math, no Pallas) ----------------
def reference(x, params, *, use_bf16_matmul=True):
    w1, w2, ln1g, ln1b, lin1w, lin1b, lin2w, lin2b, ln2g, ln2b = params
    L, K, H, _ = w1.shape
    pad = (K - 1) // 2
    mm = (lambda a: a.astype(_MM_DTYPE)) if use_bf16_matmul else (lambda a: a)

    def conv1d(x, w):  # x: (B,S,H), w: (K, H_in, H_out)
        S = x.shape[1]
        xp = jnp.pad(x, ((0, 0), (pad, pad), (0, 0)))
        out = jnp.zeros(x.shape[:2] + (w.shape[-1],), jnp.float32)
        for j in range(K):
            out = out + jnp.einsum('bsi,io->bso', mm(xp[:, j:j + S]), mm(w[j]),
                                   preferred_element_type=jnp.float32)
        return out

    for l in range(L):
        h1 = conv1d(x, w1[l])
        h2 = conv1d(x, w2[l])
        gated = h2 * jax.nn.sigmoid(h1)
        x = _layernorm(gated + x, ln1g[l], ln1b[l])
        a = jax.nn.relu(jnp.einsum('bsi,io->bso', mm(x), mm(lin1w[l]),
                                   preferred_element_type=jnp.float32) + lin1b[l])
        b = jnp.einsum('bsi,io->bso', mm(a), mm(lin2w[l]),
                       preferred_element_type=jnp.float32) + lin2b[l]
        x = _layernorm(x + b, ln2g[l], ln2b[l])
    return x


if __name__ == "__main__":
    B, S, H, L, K = 2, 8, HIDDEN, NUM_LAYERS, KERNEL_SIZE
    keys = jax.random.split(jax.random.PRNGKey(0), 8)

    x = jax.random.normal(keys[0], (B, S, H), jnp.float32)

    # deterministic synthetic parameters (shapes follow the module's __init__)
    w1 = 0.1 * jax.random.normal(keys[1], (L, K, H, H), jnp.float32)   # cnn1 weights
    w2 = 0.1 * jax.random.normal(keys[2], (L, K, H, H), jnp.float32)   # cnn2 weights
    ln1g = jnp.ones((L, H), jnp.float32)
    ln1b = jnp.zeros((L, H), jnp.float32)
    lin1w = 0.1 * jax.random.normal(keys[3], (L, H, H), jnp.float32)
    lin1b = 0.1 * jax.random.normal(keys[4], (L, H), jnp.float32)
    lin2w = 0.1 * jax.random.normal(keys[5], (L, H, H), jnp.float32)
    lin2b = 0.1 * jax.random.normal(keys[6], (L, H), jnp.float32)
    ln2g = jnp.ones((L, H), jnp.float32)
    ln2b = jnp.zeros((L, H), jnp.float32)

    params = (w1, w2, ln1g, ln1b, lin1w, lin1b, lin2w, lin2b, ln2g, ln2b)

    out = stack_gated_cnn(x, params)
    out = jax.block_until_ready(out)

    ref = reference(x, params)
    assert out.shape == (B, S, H)
    # Both paths use bf16 matmul operands with f32 accumulation; small
    # accumulation-order / bf16-re-rounding differences bound the tolerance.
    if not jnp.allclose(out, ref, atol=2e-3, rtol=2e-3):
        raise AssertionError("Pallas kernel mismatch vs pure-JAX reference")

    print("KERNEL_OK")
</pallas_src>

<mosaic_0001>
module attributes {stable_mosaic.version = 11 : i64} {
  func.func @stack_gated_cnn_kernel(%arg0: i32, %arg1: memref<8x32xf32, #tpu.memory_space<vmem>>, %arg2: memref<2x3x32x64xbf16, #tpu.memory_space<vmem>>, %arg3: memref<2x32xf32, #tpu.memory_space<vmem>>, %arg4: memref<2x32xf32, #tpu.memory_space<vmem>>, %arg5: memref<2x32x32xbf16, #tpu.memory_space<vmem>>, %arg6: memref<2x32xf32, #tpu.memory_space<vmem>>, %arg7: memref<2x32x32xbf16, #tpu.memory_space<vmem>>, %arg8: memref<2x32xf32, #tpu.memory_space<vmem>>, %arg9: memref<2x32xf32, #tpu.memory_space<vmem>>, %arg10: memref<2x32xf32, #tpu.memory_space<vmem>>, %arg11: memref<8x32xf32, #tpu.memory_space<vmem>>) attributes {dimension_semantics = [#tpu.dimension_semantics<parallel>], iteration_bounds = array<i64: 2>, scalar_prefetch = 0 : i64, scratch_operands = 0 : i64, tpu.core_type = #tpu.core_type<tc>, window_params = [{transform_indices = @transform_0, window_bounds = array<i64: 8, 32>}, {pipeline_mode = #tpu.pipeline_mode<synchronous>, transform_indices = @transform_1, window_bounds = array<i64: 2, 3, 32, 64>}, {pipeline_mode = #tpu.pipeline_mode<synchronous>, transform_indices = @transform_2, window_bounds = array<i64: 2, 32>}, {pipeline_mode = #tpu.pipeline_mode<synchronous>, transform_indices = @transform_3, window_bounds = array<i64: 2, 32>}, {pipeline_mode = #tpu.pipeline_mode<synchronous>, transform_indices = @transform_4, window_bounds = array<i64: 2, 32, 32>}, {pipeline_mode = #tpu.pipeline_mode<synchronous>, transform_indices = @transform_5, window_bounds = array<i64: 2, 32>}, {pipeline_mode = #tpu.pipeline_mode<synchronous>, transform_indices = @transform_6, window_bounds = array<i64: 2, 32, 32>}, {pipeline_mode = #tpu.pipeline_mode<synchronous>, transform_indices = @transform_7, window_bounds = array<i64: 2, 32>}, {pipeline_mode = #tpu.pipeline_mode<synchronous>, transform_indices = @transform_8, window_bounds = array<i64: 2, 32>}, {pipeline_mode = #tpu.pipeline_mode<synchronous>, transform_indices = @transform_9, window_bounds = array<i64: 2, 32>}, {transform_indices = @transform_10, window_bounds = array<i64: 8, 32>}]} {
    %c0 = arith.constant 0 : index
    %c0_0 = arith.constant 0 : index
    %0 = vector.load %arg1[%c0, %c0_0] : memref<8x32xf32, #tpu.memory_space<vmem>>, vector<8x32xf32>
    %1 = tpu.iota {dimensions = array<i32: 0>} : vector<8x1xi32>
    %c8_i32 = arith.constant 8 : i32
    %c0_i32 = arith.constant 0 : i32
    %2 = arith.cmpi eq, %c8_i32, %c0_i32 : i32
    %c1_i32 = arith.constant 1 : i32
    %3 = arith.select %2, %c1_i32, %c8_i32 : i32
    %4 = vector.broadcast %3 : i32 to vector<8x1xi32>
    %5 = arith.remsi %1, %4 : vector<8x1xi32>
    %c0_i32_1 = arith.constant 0 : i32
    %6 = vector.broadcast %c0_i32_1 : i32 to vector<8x1xi32>
    %7 = arith.cmpi ne, %5, %6 : vector<8x1xi32>
    %c0_i32_2 = arith.constant 0 : i32
    %8 = vector.broadcast %c0_i32_2 : i32 to vector<8x1xi32>
    %9 = arith.cmpi slt, %5, %8 : vector<8x1xi32>
    %c0_i32_3 = arith.constant 0 : i32
    %10 = arith.cmpi slt, %3, %c0_i32_3 : i32
    %11 = vector.broadcast %10 : i1 to vector<8x1xi1>
    %12 = vector.broadcast %11 : vector<8x1xi1> to vector<8x1xi1>
    %13 = arith.xori %9, %12 : vector<8x1xi1>
    %14 = arith.andi %13, %7 : vector<8x1xi1>
    %15 = vector.broadcast %3 : i32 to vector<8x1xi32>
    %16 = arith.addi %5, %15 : vector<8x1xi32>
    %17 = arith.select %14, %16, %5 : vector<8x1xi1>, vector<8x1xi32>
    %c-1_i32 = arith.constant -1 : i32
    %18 = vector.broadcast %c-1_i32 : i32 to vector<8x1xi32>
    %19 = arith.addi %17, %18 : vector<8x1xi32>
    %c0_i32_4 = arith.constant 0 : i32
    %20 = vector.broadcast %c0_i32_4 : i32 to vector<8x1xi32>
    %21 = arith.cmpi sge, %19, %20 : vector<8x1xi32>
    %c-1_i32_5 = arith.constant -1 : i32
    %22 = vector.broadcast %c-1_i32_5 : i32 to vector<8x1xi32>
    %23 = arith.addi %17, %22 : vector<8x1xi32>
    %c8_i32_6 = arith.constant 8 : i32
    %24 = vector.broadcast %c8_i32_6 : i32 to vector<8x1xi32>
    %25 = arith.cmpi slt, %23, %24 : vector<8x1xi32>
    %26 = arith.andi %21, %25 : vector<8x1xi1>
    %c1_i32_7 = arith.constant 1 : i32
    %27 = vector.broadcast %c1_i32_7 : i32 to vector<8x1xi32>
    %28 = arith.addi %17, %27 : vector<8x1xi32>
    %c0_i32_8 = arith.constant 0 : i32
    %29 = vector.broadcast %c0_i32_8 : i32 to vector<8x1xi32>
    %30 = arith.cmpi sge, %28, %29 : vector<8x1xi32>
    %c1_i32_9 = arith.constant 1 : i32
    %31 = vector.broadcast %c1_i32_9 : i32 to vector<8x1xi32>
    %32 = arith.addi %17, %31 : vector<8x1xi32>
    %c8_i32_10 = arith.constant 8 : i32
    %33 = vector.broadcast %c8_i32_10 : i32 to vector<8x1xi32>
    %34 = arith.cmpi slt, %32, %33 : vector<8x1xi32>
    %35 = arith.andi %30, %34 : vector<8x1xi1>
    %c0_11 = arith.constant 0 : index
    %c0_12 = arith.constant 0 : index
    %c0_13 = arith.constant 0 : index
    %c0_14 = arith.constant 0 : index
    %36 = vector.load %arg2[%c0_11, %c0_12, %c0_13, %c0_14] : memref<2x3x32x64xbf16, #tpu.memory_space<vmem>>, vector<1x3x32x64xbf16>
    %37 = vector.shape_cast %36 : vector<1x3x32x64xbf16> to vector<3x32x64xbf16>
    %cst = arith.constant 0.000000e+00 : f32
    %38 = vector.broadcast %cst : f32 to vector<8x64xf32>
    %c1_i32_15 = arith.constant 1 : i32
    %39 = tpu.dynamic_rotate %0 by %c1_i32_15 dim 0 : vector<8x32xf32>, i32 -> vector<8x32xf32>
    %cst_16 = arith.constant 0.000000e+00 : f32
    %40 = vector.shape_cast %26 : vector<8x1xi1> to vector<8x1xi1>
    %41 = vector.broadcast %40 : vector<8x1xi1> to vector<8x32xi1>
    %42 = vector.broadcast %cst_16 : f32 to vector<8x32xf32>
    %43 = arith.select %41, %39, %42 : vector<8x32xi1>, vector<8x32xf32>
    %44 = arith.truncf %43 : vector<8x32xf32> to vector<8x32xbf16>
    %45 = vector.extract_strided_slice %37 {offsets = [0, 0, 0], sizes = [1, 32, 64], strides = [1, 1, 1]} : vector<3x32x64xbf16> to vector<1x32x64xbf16>
    %46 = vector.shape_cast %45 : vector<1x32x64xbf16> to vector<32x64xbf16>
    %cst_17 = arith.constant dense<0.000000e+00> : vector<8x64xf32>
    %47 = tpu.matmul %44, %46, %cst_17 {dimension_numbers = #tpu.dot_dimension_numbers<[1], [0], [0], [1], [0, 0, 1, 1], [], []>} : vector<8x32xbf16>, vector<32x64xbf16>, vector<8x64xf32> -> vector<8x64xf32>
    %48 = arith.addf %38, %47 : vector<8x64xf32>
    %49 = arith.truncf %0 : vector<8x32xf32> to vector<8x32xbf16>
    %50 = vector.extract_strided_slice %37 {offsets = [1, 0, 0], sizes = [1, 32, 64], strides = [1, 1, 1]} : vector<3x32x64xbf16> to vector<1x32x64xbf16>
    %51 = vector.shape_cast %50 : vector<1x32x64xbf16> to vector<32x64xbf16>
    %cst_18 = arith.constant dense<0.000000e+00> : vector<8x64xf32>
    %52 = tpu.matmul %49, %51, %cst_18 {dimension_numbers = #tpu.dot_dimension_numbers<[1], [0], [0], [1], [0, 0, 1, 1], [], []>} : vector<8x32xbf16>, vector<32x64xbf16>, vector<8x64xf32> -> vector<8x64xf32>
    %53 = arith.addf %48, %52 : vector<8x64xf32>
    %c7_i32 = arith.constant 7 : i32
    %54 = tpu.dynamic_rotate %0 by %c7_i32 dim 0 : vector<8x32xf32>, i32 -> vector<8x32xf32>
    %cst_19 = arith.constant 0.000000e+00 : f32
    %55 = vector.shape_cast %35 : vector<8x1xi1> to vector<8x1xi1>
    %56 = vector.broadcast %55 : vector<8x1xi1> to vector<8x32xi1>
    %57 = vector.broadcast %cst_19 : f32 to vector<8x32xf32>
    %58 = arith.select %56, %54, %57 : vector<8x32xi1>, vector<8x32xf32>
    %59 = arith.truncf %58 : vector<8x32xf32> to vector<8x32xbf16>
    %60 = vector.extract_strided_slice %37 {offsets = [2, 0, 0], sizes = [1, 32, 64], strides = [1, 1, 1]} : vector<3x32x64xbf16> to vector<1x32x64xbf16>
    %61 = vector.shape_cast %60 : vector<1x32x64xbf16> to vector<32x64xbf16>
    %cst_20 = arith.constant dense<0.000000e+00> : vector<8x64xf32>
    %62 = tpu.matmul %59, %61, %cst_20 {dimension_numbers = #tpu.dot_dimension_numbers<[1], [0], [0], [1], [0, 0, 1, 1], [], []>} : vector<8x32xbf16>, vector<32x64xbf16>, vector<8x64xf32> -> vector<8x64xf32>
    %63 = arith.addf %53, %62 : vector<8x64xf32>
    %64 = vector.extract_strided_slice %63 {offsets = [0, 0], sizes = [8, 32], strides = [1, 1]} : vector<8x64xf32> to vector<8x32xf32>
    %65 = vector.extract_strided_slice %63 {offsets = [0, 32], sizes = [8, 32], strides = [1, 1]} : vector<8x64xf32> to vector<8x32xf32>
    %66 = arith.negf %64 : vector<8x32xf32>
    %67 = math.exp %66 : vector<8x32xf32>
    %cst_21 = arith.constant 1.000000e+00 : f32
    %68 = vector.broadcast %cst_21 : f32 to vector<8x32xf32>
    %69 = arith.addf %68, %67 : vector<8x32xf32>
    %70 = arith.divf %68, %69 : vector<8x32xf32>
    %71 = arith.mulf %65, %70 : vector<8x32xf32>
    %72 = arith.addf %71, %0 : vector<8x32xf32>
    %c0_22 = arith.constant 0 : index
    %c0_23 = arith.constant 0 : index
    %73 = vector.load %arg3[%c0_22, %c0_23] : memref<2x32xf32, #tpu.memory_space<vmem>>, vector<1x32xf32>
    %74 = vector.shape_cast %73 : vector<1x32xf32> to vector<32xf32>
    %75 = vector.shape_cast %74 : vector<32xf32> to vector<1x32xf32>
    %c0_24 = arith.constant 0 : index
    %c0_25 = arith.constant 0 : index
    %76 = vector.load %arg4[%c0_24, %c0_25] : memref<2x32xf32, #tpu.memory_space<vmem>>, vector<1x32xf32>
    %77 = vector.shape_cast %76 : vector<1x32xf32> to vector<32xf32>
    %78 = vector.shape_cast %77 : vector<32xf32> to vector<1x32xf32>
    %cst_26 = arith.constant dense<0.000000e+00> : vector<8xf32>
    %79 = vector.multi_reduction <add>, %72, %cst_26 [1] : vector<8x32xf32> to vector<8xf32>
    %80 = vector.shape_cast %79 : vector<8xf32> to vector<8x1xf32>
    %cst_27 = arith.constant 3.200000e+01 : f32
    %81 = vector.broadcast %cst_27 : f32 to vector<8x1xf32>
    %82 = arith.divf %80, %81 : vector<8x1xf32>
    %83 = vector.broadcast %82 : vector<8x1xf32> to vector<8x32xf32>
    %84 = arith.subf %72, %83 : vector<8x32xf32>
    %85 = arith.mulf %84, %84 : vector<8x32xf32>
    %cst_28 = arith.constant dense<0.000000e+00> : vector<8xf32>
    %86 = vector.multi_reduction <add>, %85, %cst_28 [1] : vector<8x32xf32> to vector<8xf32>
    %87 = vector.shape_cast %86 : vector<8xf32> to vector<8x1xf32>
    %cst_29 = arith.constant 3.200000e+01 : f32
    %88 = vector.broadcast %cst_29 : f32 to vector<8x1xf32>
    %89 = arith.divf %87, %88 : vector<8x1xf32>
    %90 = vector.broadcast %82 : vector<8x1xf32> to vector<8x32xf32>
    %91 = arith.subf %72, %90 : vector<8x32xf32>
    %cst_30 = arith.constant 9.99999974E-6 : f32
    %92 = vector.broadcast %cst_30 : f32 to vector<8x1xf32>
    %93 = arith.addf %89, %92 : vector<8x1xf32>
    %94 = math.rsqrt %93 : vector<8x1xf32>
    %95 = vector.broadcast %94 : vector<8x1xf32> to vector<8x32xf32>
    %96 = arith.mulf %91, %95 : vector<8x32xf32>
    %97 = vector.broadcast %75 : vector<1x32xf32> to vector<8x32xf32>
    %98 = arith.mulf %96, %97 : vector<8x32xf32>
    %99 = vector.broadcast %78 : vector<1x32xf32> to vector<8x32xf32>
    %100 = arith.addf %98, %99 : vector<8x32xf32>
    %101 = arith.truncf %100 : vector<8x32xf32> to vector<8x32xbf16>
    %c0_31 = arith.constant 0 : index
    %c0_32 = arith.constant 0 : index
    %c0_33 = arith.constant 0 : index
    %102 = vector.load %arg5[%c0_31, %c0_32, %c0_33] : memref<2x32x32xbf16, #tpu.memory_space<vmem>>, vector<1x32x32xbf16>
    %103 = vector.shape_cast %102 : vector<1x32x32xbf16> to vector<32x32xbf16>
    %cst_34 = arith.constant dense<0.000000e+00> : vector<8x32xf32>
    %104 = tpu.matmul %101, %103, %cst_34 {dimension_numbers = #tpu.dot_dimension_numbers<[1], [0], [0], [1], [0, 0, 1, 1], [], []>} : vector<8x32xbf16>, vector<32x32xbf16>, vector<8x32xf32> -> vector<8x32xf32>
    %c0_35 = arith.constant 0 : index
    %c0_36 = arith.constant 0 : index
    %105 = vector.load %arg6[%c0_35, %c0_36] : memref<2x32xf32, #tpu.memory_space<vmem>>, vector<1x32xf32>
    %106 = vector.shape_cast %105 : vector<1x32xf32> to vector<32xf32>
    %107 = vector.shape_cast %106 : vector<32xf32> to vector<1x32xf32>
    %108 = vector.broadcast %107 : vector<1x32xf32> to vector<8x32xf32>
    %109 = arith.addf %104, %108 : vector<8x32xf32>
    %cst_37 = arith.constant 0.000000e+00 : f32
    %110 = vector.broadcast %cst_37 : f32 to vector<8x32xf32>
    %111 = arith.maximumf %109, %110 : vector<8x32xf32>
    %112 = arith.truncf %111 : vector<8x32xf32> to vector<8x32xbf16>
    %c0_38 = arith.constant 0 : index
    %c0_39 = arith.constant 0 : index
    %c0_40 = arith.constant 0 : index
    %113 = vector.load %arg7[%c0_38, %c0_39, %c0_40] : memref<2x32x32xbf16, #tpu.memory_space<vmem>>, vector<1x32x32xbf16>
    %114 = vector.shape_cast %113 : vector<1x32x32xbf16> to vector<32x32xbf16>
    %cst_41 = arith.constant dense<0.000000e+00> : vector<8x32xf32>
    %115 = tpu.matmul %112, %114, %cst_41 {dimension_numbers = #tpu.dot_dimension_numbers<[1], [0], [0], [1], [0, 0, 1, 1], [], []>} : vector<8x32xbf16>, vector<32x32xbf16>, vector<8x32xf32> -> vector<8x32xf32>
    %c0_42 = arith.constant 0 : index
    %c0_43 = arith.constant 0 : index
    %116 = vector.load %arg8[%c0_42, %c0_43] : memref<2x32xf32, #tpu.memory_space<vmem>>, vector<1x32xf32>
    %117 = vector.shape_cast %116 : vector<1x32xf32> to vector<32xf32>
    %118 = vector.shape_cast %117 : vector<32xf32> to vector<1x32xf32>
    %119 = vector.broadcast %118 : vector<1x32xf32> to vector<8x32xf32>
    %120 = arith.addf %115, %119 : vector<8x32xf32>
    %121 = arith.addf %100, %120 : vector<8x32xf32>
    %c0_44 = arith.constant 0 : index
    %c0_45 = arith.constant 0 : index
    %122 = vector.load %arg9[%c0_44, %c0_45] : memref<2x32xf32, #tpu.memory_space<vmem>>, vector<1x32xf32>
    %123 = vector.shape_cast %122 : vector<1x32xf32> to vector<32xf32>
    %124 = vector.shape_cast %123 : vector<32xf32> to vector<1x32xf32>
    %c0_46 = arith.constant 0 : index
    %c0_47 = arith.constant 0 : index
    %125 = vector.load %arg10[%c0_46, %c0_47] : memref<2x32xf32, #tpu.memory_space<vmem>>, vector<1x32xf32>
    %126 = vector.shape_cast %125 : vector<1x32xf32> to vector<32xf32>
    %127 = vector.shape_cast %126 : vector<32xf32> to vector<1x32xf32>
    %cst_48 = arith.constant dense<0.000000e+00> : vector<8xf32>
    %128 = vector.multi_reduction <add>, %121, %cst_48 [1] : vector<8x32xf32> to vector<8xf32>
    %129 = vector.shape_cast %128 : vector<8xf32> to vector<8x1xf32>
    %cst_49 = arith.constant 3.200000e+01 : f32
    %130 = vector.broadcast %cst_49 : f32 to vector<8x1xf32>
    %131 = arith.divf %129, %130 : vector<8x1xf32>
    %132 = vector.broadcast %131 : vector<8x1xf32> to vector<8x32xf32>
    %133 = arith.subf %121, %132 : vector<8x32xf32>
    %134 = arith.mulf %133, %133 : vector<8x32xf32>
    %cst_50 = arith.constant dense<0.000000e+00> : vector<8xf32>
    %135 = vector.multi_reduction <add>, %134, %cst_50 [1] : vector<8x32xf32> to vector<8xf32>
    %136 = vector.shape_cast %135 : vector<8xf32> to vector<8x1xf32>
    %cst_51 = arith.constant 3.200000e+01 : f32
    %137 = vector.broadcast %cst_51 : f32 to vector<8x1xf32>
    %138 = arith.divf %136, %137 : vector<8x1xf32>
    %139 = vector.broadcast %131 : vector<8x1xf32> to vector<8x32xf32>
    %140 = arith.subf %121, %139 : vector<8x32xf32>
    %cst_52 = arith.constant 9.99999974E-6 : f32
    %141 = vector.broadcast %cst_52 : f32 to vector<8x1xf32>
    %142 = arith.addf %138, %141 : vector<8x1xf32>
    %143 = math.rsqrt %142 : vector<8x1xf32>
    %144 = vector.broadcast %143 : vector<8x1xf32> to vector<8x32xf32>
    %145 = arith.mulf %140, %144 : vector<8x32xf32>
    %146 = vector.broadcast %124 : vector<1x32xf32> to vector<8x32xf32>
    %147 = arith.mulf %145, %146 : vector<8x32xf32>
    %148 = vector.broadcast %127 : vector<1x32xf32> to vector<8x32xf32>
    %149 = arith.addf %147, %148 : vector<8x32xf32>
    %c1 = arith.constant 1 : index
    %c0_53 = arith.constant 0 : index
    %c0_54 = arith.constant 0 : index
    %c0_55 = arith.constant 0 : index
    %150 = vector.load %arg2[%c1, %c0_53, %c0_54, %c0_55] : memref<2x3x32x64xbf16, #tpu.memory_space<vmem>>, vector<1x3x32x64xbf16>
    %151 = vector.shape_cast %150 : vector<1x3x32x64xbf16> to vector<3x32x64xbf16>
    %cst_56 = arith.constant 0.000000e+00 : f32
    %152 = vector.broadcast %cst_56 : f32 to vector<8x64xf32>
    %c1_i32_57 = arith.constant 1 : i32
    %153 = tpu.dynamic_rotate %149 by %c1_i32_57 dim 0 : vector<8x32xf32>, i32 -> vector<8x32xf32>
    %cst_58 = arith.constant 0.000000e+00 : f32
    %154 = vector.shape_cast %26 : vector<8x1xi1> to vector<8x1xi1>
    %155 = vector.broadcast %154 : vector<8x1xi1> to vector<8x32xi1>
    %156 = vector.broadcast %cst_58 : f32 to vector<8x32xf32>
    %157 = arith.select %155, %153, %156 : vector<8x32xi1>, vector<8x32xf32>
    %158 = arith.truncf %157 : vector<8x32xf32> to vector<8x32xbf16>
    %159 = vector.extract_strided_slice %151 {offsets = [0, 0, 0], sizes = [1, 32, 64], strides = [1, 1, 1]} : vector<3x32x64xbf16> to vector<1x32x64xbf16>
    %160 = vector.shape_cast %159 : vector<1x32x64xbf16> to vector<32x64xbf16>
    %cst_59 = arith.constant dense<0.000000e+00> : vector<8x64xf32>
    %161 = tpu.matmul %158, %160, %cst_59 {dimension_numbers = #tpu.dot_dimension_numbers<[1], [0], [0], [1], [0, 0, 1, 1], [], []>} : vector<8x32xbf16>, vector<32x64xbf16>, vector<8x64xf32> -> vector<8x64xf32>
    %162 = arith.addf %152, %161 : vector<8x64xf32>
    %163 = arith.truncf %149 : vector<8x32xf32> to vector<8x32xbf16>
    %164 = vector.extract_strided_slice %151 {offsets = [1, 0, 0], sizes = [1, 32, 64], strides = [1, 1, 1]} : vector<3x32x64xbf16> to vector<1x32x64xbf16>
    %165 = vector.shape_cast %164 : vector<1x32x64xbf16> to vector<32x64xbf16>
    %cst_60 = arith.constant dense<0.000000e+00> : vector<8x64xf32>
    %166 = tpu.matmul %163, %165, %cst_60 {dimension_numbers = #tpu.dot_dimension_numbers<[1], [0], [0], [1], [0, 0, 1, 1], [], []>} : vector<8x32xbf16>, vector<32x64xbf16>, vector<8x64xf32> -> vector<8x64xf32>
    %167 = arith.addf %162, %166 : vector<8x64xf32>
    %c7_i32_61 = arith.constant 7 : i32
    %168 = tpu.dynamic_rotate %149 by %c7_i32_61 dim 0 : vector<8x32xf32>, i32 -> vector<8x32xf32>
    %cst_62 = arith.constant 0.000000e+00 : f32
    %169 = vector.shape_cast %35 : vector<8x1xi1> to vector<8x1xi1>
    %170 = vector.broadcast %169 : vector<8x1xi1> to vector<8x32xi1>
    %171 = vector.broadcast %cst_62 : f32 to vector<8x32xf32>
    %172 = arith.select %170, %168, %171 : vector<8x32xi1>, vector<8x32xf32>
    %173 = arith.truncf %172 : vector<8x32xf32> to vector<8x32xbf16>
    %174 = vector.extract_strided_slice %151 {offsets = [2, 0, 0], sizes = [1, 32, 64], strides = [1, 1, 1]} : vector<3x32x64xbf16> to vector<1x32x64xbf16>
    %175 = vector.shape_cast %174 : vector<1x32x64xbf16> to vector<32x64xbf16>
    %cst_63 = arith.constant dense<0.000000e+00> : vector<8x64xf32>
    %176 = tpu.matmul %173, %175, %cst_63 {dimension_numbers = #tpu.dot_dimension_numbers<[1], [0], [0], [1], [0, 0, 1, 1], [], []>} : vector<8x32xbf16>, vector<32x64xbf16>, vector<8x64xf32> -> vector<8x64xf32>
    %177 = arith.addf %167, %176 : vector<8x64xf32>
    %178 = vector.extract_strided_slice %177 {offsets = [0, 0], sizes = [8, 32], strides = [1, 1]} : vector<8x64xf32> to vector<8x32xf32>
    %179 = vector.extract_strided_slice %177 {offsets = [0, 32], sizes = [8, 32], strides = [1, 1]} : vector<8x64xf32> to vector<8x32xf32>
    %180 = arith.negf %178 : vector<8x32xf32>
    %181 = math.exp %180 : vector<8x32xf32>
    %cst_64 = arith.constant 1.000000e+00 : f32
    %182 = vector.broadcast %cst_64 : f32 to vector<8x32xf32>
    %183 = arith.addf %182, %181 : vector<8x32xf32>
    %184 = arith.divf %182, %183 : vector<8x32xf32>
    %185 = arith.mulf %179, %184 : vector<8x32xf32>
    %186 = arith.addf %185, %149 : vector<8x32xf32>
    %c1_65 = arith.constant 1 : index
    %c0_66 = arith.constant 0 : index
    %187 = vector.load %arg3[%c1_65, %c0_66] : memref<2x32xf32, #tpu.memory_space<vmem>>, vector<1x32xf32>
    %188 = vector.shape_cast %187 : vector<1x32xf32> to vector<32xf32>
    %189 = vector.shape_cast %188 : vector<32xf32> to vector<1x32xf32>
    %c1_67 = arith.constant 1 : index
    %c0_68 = arith.constant 0 : index
    %190 = vector.load %arg4[%c1_67, %c0_68] : memref<2x32xf32, #tpu.memory_space<vmem>>, vector<1x32xf32>
    %191 = vector.shape_cast %190 : vector<1x32xf32> to vector<32xf32>
    %192 = vector.shape_cast %191 : vector<32xf32> to vector<1x32xf32>
    %cst_69 = arith.constant dense<0.000000e+00> : vector<8xf32>
    %193 = vector.multi_reduction <add>, %186, %cst_69 [1] : vector<8x32xf32> to vector<8xf32>
    %194 = vector.shape_cast %193 : vector<8xf32> to vector<8x1xf32>
    %cst_70 = arith.constant 3.200000e+01 : f32
    %195 = vector.broadcast %cst_70 : f32 to vector<8x1xf32>
    %196 = arith.divf %194, %195 : vector<8x1xf32>
    %197 = vector.broadcast %196 : vector<8x1xf32> to vector<8x32xf32>
    %198 = arith.subf %186, %197 : vector<8x32xf32>
    %199 = arith.mulf %198, %198 : vector<8x32xf32>
    %cst_71 = arith.constant dense<0.000000e+00> : vector<8xf32>
    %200 = vector.multi_reduction <add>, %199, %cst_71 [1] : vector<8x32xf32> to vector<8xf32>
    %201 = vector.shape_cast %200 : vector<8xf32> to vector<8x1xf32>
    %cst_72 = arith.constant 3.200000e+01 : f32
    %202 = vector.broadcast %cst_72 : f32 to vector<8x1xf32>
    %203 = arith.divf %201, %202 : vector<8x1xf32>
    %204 = vector.broadcast %196 : vector<8x1xf32> to vector<8x32xf32>
    %205 = arith.subf %186, %204 : vector<8x32xf32>
    %cst_73 = arith.constant 9.99999974E-6 : f32
    %206 = vector.broadcast %cst_73 : f32 to vector<8x1xf32>
    %207 = arith.addf %203, %206 : vector<8x1xf32>
    %208 = math.rsqrt %207 : vector<8x1xf32>
    %209 = vector.broadcast %208 : vector<8x1xf32> to vector<8x32xf32>
    %210 = arith.mulf %205, %209 : vector<8x32xf32>
    %211 = vector.broadcast %189 : vector<1x32xf32> to vector<8x32xf32>
    %212 = arith.mulf %210, %211 : vector<8x32xf32>
    %213 = vector.broadcast %192 : vector<1x32xf32> to vector<8x32xf32>
    %214 = arith.addf %212, %213 : vector<8x32xf32>
    %215 = arith.truncf %214 : vector<8x32xf32> to vector<8x32xbf16>
    %c1_74 = arith.constant 1 : index
    %c0_75 = arith.constant 0 : index
    %c0_76 = arith.constant 0 : index
    %216 = vector.load %arg5[%c1_74, %c0_75, %c0_76] : memref<2x32x32xbf16, #tpu.memory_space<vmem>>, vector<1x32x32xbf16>
    %217 = vector.shape_cast %216 : vector<1x32x32xbf16> to vector<32x32xbf16>
    %cst_77 = arith.constant dense<0.000000e+00> : vector<8x32xf32>
    %218 = tpu.matmul %215, %217, %cst_77 {dimension_numbers = #tpu.dot_dimension_numbers<[1], [0], [0], [1], [0, 0, 1, 1], [], []>} : vector<8x32xbf16>, vector<32x32xbf16>, vector<8x32xf32> -> vector<8x32xf32>
    %c1_78 = arith.constant 1 : index
    %c0_79 = arith.constant 0 : index
    %219 = vector.load %arg6[%c1_78, %c0_79] : memref<2x32xf32, #tpu.memory_space<vmem>>, vector<1x32xf32>
    %220 = vector.shape_cast %219 : vector<1x32xf32> to vector<32xf32>
    %221 = vector.shape_cast %220 : vector<32xf32> to vector<1x32xf32>
    %222 = vector.broadcast %221 : vector<1x32xf32> to vector<8x32xf32>
    %223 = arith.addf %218, %222 : vector<8x32xf32>
    %cst_80 = arith.constant 0.000000e+00 : f32
    %224 = vector.broadcast %cst_80 : f32 to vector<8x32xf32>
    %225 = arith.maximumf %223, %224 : vector<8x32xf32>
    %226 = arith.truncf %225 : vector<8x32xf32> to vector<8x32xbf16>
    %c1_81 = arith.constant 1 : index
    %c0_82 = arith.constant 0 : index
    %c0_83 = arith.constant 0 : index
    %227 = vector.load %arg7[%c1_81, %c0_82, %c0_83] : memref<2x32x32xbf16, #tpu.memory_space<vmem>>, vector<1x32x32xbf16>
    %228 = vector.shape_cast %227 : vector<1x32x32xbf16> to vector<32x32xbf16>
    %cst_84 = arith.constant dense<0.000000e+00> : vector<8x32xf32>
    %229 = tpu.matmul %226, %228, %cst_84 {dimension_numbers = #tpu.dot_dimension_numbers<[1], [0], [0], [1], [0, 0, 1, 1], [], []>} : vector<8x32xbf16>, vector<32x32xbf16>, vector<8x32xf32> -> vector<8x32xf32>
    %c1_85 = arith.constant 1 : index
    %c0_86 = arith.constant 0 : index
    %230 = vector.load %arg8[%c1_85, %c0_86] : memref<2x32xf32, #tpu.memory_space<vmem>>, vector<1x32xf32>
    %231 = vector.shape_cast %230 : vector<1x32xf32> to vector<32xf32>
    %232 = vector.shape_cast %231 : vector<32xf32> to vector<1x32xf32>
    %233 = vector.broadcast %232 : vector<1x32xf32> to vector<8x32xf32>
    %234 = arith.addf %229, %233 : vector<8x32xf32>
    %235 = arith.addf %214, %234 : vector<8x32xf32>
    %c1_87 = arith.constant 1 : index
    %c0_88 = arith.constant 0 : index
    %236 = vector.load %arg9[%c1_87, %c0_88] : memref<2x32xf32, #tpu.memory_space<vmem>>, vector<1x32xf32>
    %237 = vector.shape_cast %236 : vector<1x32xf32> to vector<32xf32>
    %238 = vector.shape_cast %237 : vector<32xf32> to vector<1x32xf32>
    %c1_89 = arith.constant 1 : index
    %c0_90 = arith.constant 0 : index
    %239 = vector.load %arg10[%c1_89, %c0_90] : memref<2x32xf32, #tpu.memory_space<vmem>>, vector<1x32xf32>
    %240 = vector.shape_cast %239 : vector<1x32xf32> to vector<32xf32>
    %241 = vector.shape_cast %240 : vector<32xf32> to vector<1x32xf32>
    %cst_91 = arith.constant dense<0.000000e+00> : vector<8xf32>
    %242 = vector.multi_reduction <add>, %235, %cst_91 [1] : vector<8x32xf32> to vector<8xf32>
    %243 = vector.shape_cast %242 : vector<8xf32> to vector<8x1xf32>
    %cst_92 = arith.constant 3.200000e+01 : f32
    %244 = vector.broadcast %cst_92 : f32 to vector<8x1xf32>
    %245 = arith.divf %243, %244 : vector<8x1xf32>
    %246 = vector.broadcast %245 : vector<8x1xf32> to vector<8x32xf32>
    %247 = arith.subf %235, %246 : vector<8x32xf32>
    %248 = arith.mulf %247, %247 : vector<8x32xf32>
    %cst_93 = arith.constant dense<0.000000e+00> : vector<8xf32>
    %249 = vector.multi_reduction <add>, %248, %cst_93 [1] : vector<8x32xf32> to vector<8xf32>
    %250 = vector.shape_cast %249 : vector<8xf32> to vector<8x1xf32>
    %cst_94 = arith.constant 3.200000e+01 : f32
    %251 = vector.broadcast %cst_94 : f32 to vector<8x1xf32>
    %252 = arith.divf %250, %251 : vector<8x1xf32>
    %253 = vector.broadcast %245 : vector<8x1xf32> to vector<8x32xf32>
    %254 = arith.subf %235, %253 : vector<8x32xf32>
    %cst_95 = arith.constant 9.99999974E-6 : f32
    %255 = vector.broadcast %cst_95 : f32 to vector<8x1xf32>
    %256 = arith.addf %252, %255 : vector<8x1xf32>
    %257 = math.rsqrt %256 : vector<8x1xf32>
    %258 = vector.broadcast %257 : vector<8x1xf32> to vector<8x32xf32>
    %259 = arith.mulf %254, %258 : vector<8x32xf32>
    %260 = vector.broadcast %238 : vector<1x32xf32> to vector<8x32xf32>
    %261 = arith.mulf %259, %260 : vector<8x32xf32>
    %262 = vector.broadcast %241 : vector<1x32xf32> to vector<8x32xf32>
    %263 = arith.addf %261, %262 : vector<8x32xf32>
    %c0_96 = arith.constant 0 : index
    %c0_97 = arith.constant 0 : index
    %264 = vector.load %arg11[%c0_96, %c0_97] : memref<8x32xf32, #tpu.memory_space<vmem>>, vector<8x32xf32>
    tpu.vector_store %arg11[%c0_96, %c0_97], %263 {strides = array<i32>} : memref<8x32xf32, #tpu.memory_space<vmem>>, vector<8x32xf32>,
    return
  }
  func.func @transform_0(%arg0: i32) -> (i32, i32) {
    %c0_i32 = arith.constant 0 : i32
    %c0_i32_0 = arith.constant 0 : i32
    return %arg0, %c0_i32 : i32, i32
  }
  func.func @transform_1(%arg0: i32) -> (i32, i32, i32, i32) {
    %c0_i32 = arith.constant 0 : i32
    %c0_i32_0 = arith.constant 0 : i32
    %c0_i32_1 = arith.constant 0 : i32
    %c0_i32_2 = arith.constant 0 : i32
    %c0_i32_3 = arith.constant 0 : i32
    return %c0_i32, %c0_i32_0, %c0_i32_1, %c0_i32_2 : i32, i32, i32, i32
  }
  func.func @transform_2(%arg0: i32) -> (i32, i32) {
    %c0_i32 = arith.constant 0 : i32
    %c0_i32_0 = arith.constant 0 : i32
    %c0_i32_1 = arith.constant 0 : i32
    return %c0_i32, %c0_i32_0 : i32, i32
  }
  func.func @transform_3(%arg0: i32) -> (i32, i32) {
    %c0_i32 = arith.constant 0 : i32
    %c0_i32_0 = arith.constant 0 : i32
    %c0_i32_1 = arith.constant 0 : i32
    return %c0_i32, %c0_i32_0 : i32, i32
  }
  func.func @transform_4(%arg0: i32) -> (i32, i32, i32) {
    %c0_i32 = arith.constant 0 : i32
    %c0_i32_0 = arith.constant 0 : i32
    %c0_i32_1 = arith.constant 0 : i32
    %c0_i32_2 = arith.constant 0 : i32
    return %c0_i32, %c0_i32_0, %c0_i32_1 : i32, i32, i32
  }
  func.func @transform_5(%arg0: i32) -> (i32, i32) {
    %c0_i32 = arith.constant 0 : i32
    %c0_i32_0 = arith.constant 0 : i32
    %c0_i32_1 = arith.constant 0 : i32
    return %c0_i32, %c0_i32_0 : i32, i32
  }
  func.func @transform_6(%arg0: i32) -> (i32, i32, i32) {
    %c0_i32 = arith.constant 0 : i32
    %c0_i32_0 = arith.constant 0 : i32
    %c0_i32_1 = arith.constant 0 : i32
    %c0_i32_2 = arith.constant 0 : i32
    return %c0_i32, %c0_i32_0, %c0_i32_1 : i32, i32, i32
  }
  func.func @transform_7(%arg0: i32) -> (i32, i32) {
    %c0_i32 = arith.constant 0 : i32
    %c0_i32_0 = arith.constant 0 : i32
    %c0_i32_1 = arith.constant 0 : i32
    return %c0_i32, %c0_i32_0 : i32, i32
  }
  func.func @transform_8(%arg0: i32) -> (i32, i32) {
    %c0_i32 = arith.constant 0 : i32
    %c0_i32_0 = arith.constant 0 : i32
    %c0_i32_1 = arith.constant 0 : i32
    return %c0_i32, %c0_i32_0 : i32, i32
  }
  func.func @transform_9(%arg0: i32) -> (i32, i32) {
    %c0_i32 = arith.constant 0 : i32
    %c0_i32_0 = arith.constant 0 : i32
    %c0_i32_1 = arith.constant 0 : i32
    return %c0_i32, %c0_i32_0 : i32, i32
  }
  func.func @transform_10(%arg0: i32) -> (i32, i32) {
    %c0_i32 = arith.constant 0 : i32
    %c0_i32_0 = arith.constant 0 : i32
    return %arg0, %c0_i32 : i32, i32
  }
}

</mosaic_0001>

<llo_original>
// kernel: tpu_custom_call.1
$region0: #{tpu_custom_call.1}
  #allocation0 [shape = 'u32[]', space=smem, size = 0x4, offset = 0x4, fixed_abs, tag = 'smem constant byte address 0x4 - core index']
  #allocation1 [shape = 'u32[72,128]{1,0:T(1,128)}', space=vmem, size = 0x9000, scoped, tag = 'internal scratch']
  %s0 = inlined_call_operand.hbm [shape: f32[16,32], index: 0, kind: input, shape index: {}]
  %s1 = inlined_call_operand.hbm [shape: bf16[2,3,32,64], index: 1, kind: input, shape index: {}]
  %s2 = inlined_call_operand.hbm [shape: f32[2,32], index: 2, kind: input, shape index: {}]
  %s3 = inlined_call_operand.vmem [shape: f32[2,32], index: 3, kind: input, shape index: {}]
  %s4 = inlined_call_operand.hbm [shape: bf16[2,32,32], index: 4, kind: input, shape index: {}]
  %s5 = inlined_call_operand.vmem [shape: f32[2,32], index: 5, kind: input, shape index: {}]
  %s6 = inlined_call_operand.hbm [shape: bf16[2,32,32], index: 6, kind: input, shape index: {}]
  %s7 = inlined_call_operand.vmem [shape: f32[2,32], index: 7, kind: input, shape index: {}]
  %s8 = inlined_call_operand.hbm [shape: f32[2,32], index: 8, kind: input, shape index: {}]
  %s9 = inlined_call_operand.vmem [shape: f32[2,32], index: 9, kind: input, shape index: {}]
  %s10 = inlined_call_operand.hbm [shape: f32[16,32], index: 10, kind: output, shape index: {}]
  %s11 = sld [smem:[#allocation0]]
  $region97: #{tpu_custom_call.1} parent=0
    _
  %s13 = ssub.s32 1, %s11
  %s14 = scalar_select 0, %s13, %s11
  $region1: #{tpu_custom_call.1} parent=0
    #allocation2 [shape = 'u8[8192]{0}', space=vmem, size = 0x2000, scoped, tag = 'input window, operand 0']
    #allocation3 [shape = 's32[2]{0}', space=sflag, size = 0x8, scoped, tag = 'scoped memory for tpu_custom_call.1']
    #allocation4 [shape = 's32[2]{0}', space=sflag, size = 0x8, scoped, tag = 'scoped memory for tpu_custom_call.1']
    #allocation5 [shape = 'u8[49152]{0}', space=vmem, size = 0xc000, scoped, tag = 'input window, operand 1, single buffered']
    #allocation6 [shape = 's32[1]{0}', space=sflag, size = 0x4, scoped, tag = 'scoped memory for tpu_custom_call.1']
    #allocation7 [shape = 'u8[1024]{0}', space=vmem, size = 0x400, scoped, tag = 'input window, operand 2, single buffered']
    #allocation8 [shape = 'u8[16384]{0}', space=vmem, size = 0x4000, scoped, tag = 'input window, operand 4, single buffered']
    #allocation9 [shape = 's32[1]{0}', space=sflag, size = 0x4, scoped, tag = 'scoped memory for tpu_custom_call.1']
    #allocation10 [shape = 'u8[16384]{0}', space=vmem, size = 0x4000, scoped, tag = 'input window, operand 6, single buffered']
    #allocation11 [shape = 'u8[1024]{0}', space=vmem, size = 0x400, scoped, tag = 'input window, operand 8, single buffered']
    #allocation12 [shape = 's32[1]{0}', space=sflag, size = 0x4, scoped, tag = 'scoped memory for tpu_custom_call.1']
    #allocation13 [shape = 'u8[8192]{0}', space=vmem, size = 0x2000, scoped, tag = 'output window, operand 0']
    %15 = vsyncpa [#allocation3], 0
    %s16 = scalar_lea.sflag [#allocation3], 1
    %17 = vsyncpa %s16, 0
    %18 = vsyncpa [#allocation6], 0
    %19 = vsyncpa [#allocation9], 0
    %20 = vsyncpa [#allocation12], 0
    %21 = vsyncpa [#allocation4], 0
    %s22 = scalar_lea.sflag [#allocation4], 1
    %23 = vsyncpa %s22, 0
    loop: start=0, step=1, limit=4
    $region2: #{tpu_custom_call.1} parent=1 // loop_pre_header
      _
    $region3: #{tpu_custom_call.1} parent=1 // loop_header
      %s25 = sphi 0, %s29
      %p26 = scmp.ge.s32.totalorder %s25, 4
      %s35 = sphi 0, %s37
      %s38 = sphi 0, %s35
      %s39 = sphi 0, %s38
      %s55 = sphi 0, %s39
      %s59 = sphi 0, %s59
      %s61 = sphi 0, %s59
      %s62 = sphi 0, %s61
      %s76 = sphi 0, %s62
      %s80 = sphi 0, %s80
      %s82 = sphi 0, %s80
      %s83 = sphi 0, %s82
      %s97 = sphi 0, %s83
      %s101 = sphi 0, %s101
      %s103 = sphi 0, %s101
      %s104 = sphi 0, %s103
      %s118 = sphi 0, %s104
      %s122 = sphi 0, %s122
      %s124 = sphi 0, %s122
      %s125 = sphi 0, %s124
      %s139 = sphi 0, %s125
      %s143 = sphi 0, %s143
      %s145 = sphi 0, %s143
      %s146 = sphi 0, %s145
      %s160 = sphi 0, %s146
      %s164 = sphi 0, %s164
      %s166 = sphi 0, %s164
      %s167 = sphi 0, %s166
      %s181 = sphi 0, %s167
      %s185 = sphi 0, %s185
      %s187 = sphi 0, %s185
      %s188 = sphi 0, %s187
      %s202 = sphi 0, %s188
      %s206 = sphi 0, %s206
      %s208 = sphi 0, %s206
      %s209 = sphi 0, %s208
      %s223 = sphi 0, %s209
      %s227 = sphi 0, %s227
      %s229 = sphi 0, %s227
      %s230 = sphi 0, %s229
      %s244 = sphi 0, %s230
      %s250 = sphi 0, %s252
      %s253 = sphi 0, %s250
      %s254 = sphi 0, %s253
      %s270 = sphi 0, %s254
    $region4: #{tpu_custom_call.1} parent=1 // loop_header_branch
      %28 = sbr.rel (%p26) target = $region8
    $region5: #{tpu_custom_call.1} parent=1 // loop_body
      %s30 = ssub.s32 %s25, 1
      %s31 = ssub.s32 %s25, 2
      %s32 = sadd.s32 %s25, 1
      %s33 = ssub.s32 %s25, %s32
      %p34 = scmp.eq.s32.totalorder %s33, 0
      %s36 = sadd.s32 %s35, 1
      %s37 = scalar_select %p34, %s35, %s36
      %p40 = pneg %p34
      %p41 = scmp.eq.s32.totalorder %s25, 1
      %p42 = por %p40, %p41
      %p43 = scmp.ne.s32.totalorder %s35, %s38
      %p44 = scmp.eq.s32.totalorder %s25, 0
      %p45 = por %p43, %p44
      %p46 = scmp.ne.s32.totalorder %s35, %s38
      %p47 = scmp.eq.s32.totalorder %s30, 1
      %p48 = por %p46, %p47
      %p49 = scmp.ne.s32.totalorder %s38, %s39
      %p50 = scmp.eq.s32.totalorder %s30, 0
      %p51 = por %p49, %p50
      %p52 = scmp.ne.s32.totalorder %s38, %s39
      %p53 = scmp.eq.s32.totalorder %s31, 1
      %p54 = por %p52, %p53
      %p56 = scmp.ne.s32.totalorder %s39, %s55
      %p57 = scmp.eq.s32.totalorder %s31, 0
      %p58 = por %p56, %p57
      %s60 = sadd.s32 %s59, 1
      %p63 = scmp.eq.s32.totalorder %s25, 1
      %p64 = scmp.ne.s32.totalorder %s59, %s61
      %p65 = scmp.eq.s32.totalorder %s25, 0
      %p66 = por %p64, %p65
      %p67 = scmp.ne.s32.totalorder %s59, %s61
      %p68 = scmp.eq.s32.totalorder %s30, 1
      %p69 = por %p67, %p68
      %p70 = scmp.ne.s32.totalorder %s61, %s62
      %p71 = scmp.eq.s32.totalorder %s30, 0
      %p72 = por %p70, %p71
      %p73 = scmp.ne.s32.totalorder %s61, %s62
      %p74 = scmp.eq.s32.totalorder %s31, 1
      %p75 = por %p73, %p74
      %p77 = scmp.ne.s32.totalorder %s62, %s76
      %p78 = scmp.eq.s32.totalorder %s31, 0
      %p79 = por %p77, %p78
      %s81 = sadd.s32 %s80, 1
      %p84 = scmp.eq.s32.totalorder %s25, 1
      %p85 = scmp.ne.s32.totalorder %s80, %s82
      %p86 = scmp.eq.s32.totalorder %s25, 0
      %p87 = por %p85, %p86
      %p88 = scmp.ne.s32.totalorder %s80, %s82
      %p89 = scmp.eq.s32.totalorder %s30, 1
      %p90 = por %p88, %p89
      %p91 = scmp.ne.s32.totalorder %s82, %s83
      %p92 = scmp.eq.s32.totalorder %s30, 0
      %p93 = por %p91, %p92
      %p94 = scmp.ne.s32.totalorder %s82, %s83
      %p95 = scmp.eq.s32.totalorder %s31, 1
      %p96 = por %p94, %p95
      %p98 = scmp.ne.s32.totalorder %s83, %s97
      %p99 = scmp.eq.s32.totalorder %s31, 0
      %p100 = por %p98, %p99
      %s102 = sadd.s32 %s101, 1
      %p105 = scmp.eq.s32.totalorder %s25, 1
      %p106 = scmp.ne.s32.totalorder %s101, %s103
      %p107 = scmp.eq.s32.totalorder %s25, 0
      %p108 = por %p106, %p107
      %p109 = scmp.ne.s32.totalorder %s101, %s103
      %p110 = scmp.eq.s32.totalorder %s30, 1
      %p111 = por %p109, %p110
      %p112 = scmp.ne.s32.totalorder %s103, %s104
      %p113 = scmp.eq.s32.totalorder %s30, 0
      %p114 = por %p112, %p113
      %p115 = scmp.ne.s32.totalorder %s103, %s104
      %p116 = scmp.eq.s32.totalorder %s31, 1
      %p117 = por %p115, %p116
      %p119 = scmp.ne.s32.totalorder %s104, %s118
      %p120 = scmp.eq.s32.totalorder %s31, 0
      %p121 = por %p119, %p120
      %s123 = sadd.s32 %s122, 1
      %p126 = scmp.eq.s32.totalorder %s25, 1
      %p127 = scmp.ne.s32.totalorder %s122, %s124
      %p128 = scmp.eq.s32.totalorder %s25, 0
      %p129 = por %p127, %p128
      %p130 = scmp.ne.s32.totalorder %s122, %s124
      %p131 = scmp.eq.s32.totalorder %s30, 1
      %p132 = por %p130, %p131
      %p133 = scmp.ne.s32.totalorder %s124, %s125
      %p134 = scmp.eq.s32.totalorder %s30, 0
      %p135 = por %p133, %p134
      %p136 = scmp.ne.s32.totalorder %s124, %s125
      %p137 = scmp.eq.s32.totalorder %s31, 1
      %p138 = por %p136, %p137
      %p140 = scmp.ne.s32.totalorder %s125, %s139
      %p141 = scmp.eq.s32.totalorder %s31, 0
      %p142 = por %p140, %p141
      %s144 = sadd.s32 %s143, 1
      %p147 = scmp.eq.s32.totalorder %s25, 1
      %p148 = scmp.ne.s32.totalorder %s143, %s145
      %p149 = scmp.eq.s32.totalorder %s25, 0
      %p150 = por %p148, %p149
      %p151 = scmp.ne.s32.totalorder %s143, %s145
      %p152 = scmp.eq.s32.totalorder %s30, 1
      %p153 = por %p151, %p152
      %p154 = scmp.ne.s32.totalorder %s145, %s146
      %p155 = scmp.eq.s32.totalorder %s30, 0
      %p156 = por %p154, %p155
      %p157 = scmp.ne.s32.totalorder %s145, %s146
      %p158 = scmp.eq.s32.totalorder %s31, 1
      %p159 = por %p157, %p158
      %p161 = scmp.ne.s32.totalorder %s146, %s160
      %p162 = scmp.eq.s32.totalorder %s31, 0
      %p163 = por %p161, %p162
      %s165 = sadd.s32 %s164, 1
      %p168 = scmp.eq.s32.totalorder %s25, 1
      %p169 = scmp.ne.s32.totalorder %s164, %s166
      %p170 = scmp.eq.s32.totalorder %s25, 0
      %p171 = por %p169, %p170
      %p172 = scmp.ne.s32.totalorder %s164, %s166
      %p173 = scmp.eq.s32.totalorder %s30, 1
      %p174 = por %p172, %p173
      %p175 = scmp.ne.s32.totalorder %s166, %s167
      %p176 = scmp.eq.s32.totalorder %s30, 0
      %p177 = por %p175, %p176
      %p178 = scmp.ne.s32.totalorder %s166, %s167
      %p179 = scmp.eq.s32.totalorder %s31, 1
      %p180 = por %p178, %p179
      %p182 = scmp.ne.s32.totalorder %s167, %s181
      %p183 = scmp.eq.s32.totalorder %s31, 0
      %p184 = por %p182, %p183
      %s186 = sadd.s32 %s185, 1
      %p189 = scmp.eq.s32.totalorder %s25, 1
      %p190 = scmp.ne.s32.totalorder %s185, %s187
      %p191 = scmp.eq.s32.totalorder %s25, 0
      %p192 = por %p190, %p191
      %p193 = scmp.ne.s32.totalorder %s185, %s187
      %p194 = scmp.eq.s32.totalorder %s30, 1
      %p195 = por %p193, %p194
      %p196 = scmp.ne.s32.totalorder %s187, %s188
      %p197 = scmp.eq.s32.totalorder %s30, 0
      %p198 = por %p196, %p197
      %p199 = scmp.ne.s32.totalorder %s187, %s188
      %p200 = scmp.eq.s32.totalorder %s31, 1
      %p201 = por %p199, %p200
      %p203 = scmp.ne.s32.totalorder %s188, %s202
      %p204 = scmp.eq.s32.totalorder %s31, 0
      %p205 = por %p203, %p204
      %s207 = sadd.s32 %s206, 1
      %p210 = scmp.eq.s32.totalorder %s25, 1
      %p211 = scmp.ne.s32.totalorder %s206, %s208
      %p212 = scmp.eq.s32.totalorder %s25, 0
      %p213 = por %p211, %p212
      %p214 = scmp.ne.s32.totalorder %s206, %s208
      %p215 = scmp.eq.s32.totalorder %s30, 1
      %p216 = por %p214, %p215
      %p217 = scmp.ne.s32.totalorder %s208, %s209
      %p218 = scmp.eq.s32.totalorder %s30, 0
      %p219 = por %p217, %p218
      %p220 = scmp.ne.s32.totalorder %s208, %s209
      %p221 = scmp.eq.s32.totalorder %s31, 1
      %p222 = por %p220, %p221
      %p224 = scmp.ne.s32.totalorder %s209, %s223
      %p225 = scmp.eq.s32.totalorder %s31, 0
      %p226 = por %p224, %p225
      %s228 = sadd.s32 %s227, 1
      %p231 = scmp.eq.s32.totalorder %s25, 1
      %p232 = scmp.ne.s32.totalorder %s227, %s229
      %p233 = scmp.eq.s32.totalorder %s25, 0
      %p234 = por %p232, %p233
      %p235 = scmp.ne.s32.totalorder %s227, %s229
      %p236 = scmp.eq.s32.totalorder %s30, 1
      %p237 = por %p235, %p236
      %p238 = scmp.ne.s32.totalorder %s229, %s230
      %p239 = scmp.eq.s32.totalorder %s30, 0
      %p240 = por %p238, %p239
      %p241 = scmp.ne.s32.totalorder %s229, %s230
      %p242 = scmp.eq.s32.totalorder %s31, 1
      %p243 = por %p241, %p242
      %p245 = scmp.ne.s32.totalorder %s230, %s244
      %p246 = scmp.eq.s32.totalorder %s31, 0
      %p247 = por %p245, %p246
      %s248 = ssub.s32 %s25, %s32
      %p249 = scmp.eq.s32.totalorder %s248, 0
      %s251 = sadd.s32 %s250, 1
      %s252 = scalar_select %p249, %s250, %s251
      %p255 = pneg %p249
      %p256 = scmp.eq.s32.totalorder %s25, 1
      %p257 = por %p255, %p256
      %p258 = scmp.ne.s32.totalorder %s250, %s253
      %p259 = scmp.eq.s32.totalorder %s25, 0
      %p260 = por %p258, %p259
      %p261 = scmp.ne.s32.totalorder %s250, %s253
      %p262 = scmp.eq.s32.totalorder %s30, 1
      %p263 = por %p261, %p262
      %p264 = scmp.ne.s32.totalorder %s253, %s254
      %p265 = scmp.eq.s32.totalorder %s30, 0
      %p266 = por %p264, %p265
      %p267 = scmp.ne.s32.totalorder %s253, %s254
      %p268 = scmp.eq.s32.totalorder %s31, 1
      %p269 = por %p267, %p268
      %p271 = scmp.ne.s32.totalorder %s254, %s270
      %p272 = scmp.eq.s32.totalorder %s31, 0
      %p273 = por %p271, %p272
      %p274 = scmp.le.s32.totalorder 1, %s25
      %p275 = scmp.lt.s32.totalorder %s25, 3
      %p276 = pnand %p274, %p275
      %p277 = pneg %p276
      // Predicated region
      $region9: #{tpu_custom_call.1} parent=5 // pred_check
        _
      $region10: #{tpu_custom_call.1} parent=5 // pred_check_branch
        %279 = sbr.rel (%p276) target = $region12
      $region11: #{tpu_custom_call.1} parent=5 // pred_region
        %s280 = ssub.s32 %s25, 1
        // Predicated region
        $region13: #{tpu_custom_call.1} parent=11 // pred_check
          %p281 = pneg %p72
        $region14: #{tpu_custom_call.1} parent=11 // pred_check_branch
          %283 = sbr.rel (%p281) target = $region16
        $region15: #{tpu_custom_call.1} parent=11 // pred_region
          %285 = vsyncadd [#allocation6], 0
          %s286 = sshll.u32 %s1, 4
          %s287 = int_to_ptr.hbm [resolvable:$true] %s286
          %s288 = sshll.u32 [#allocation5], 4
          %s289 = int_to_ptr.vmem [resolvable:$true] %s288
          %294 = dma.hbm_to_vmem [thread:$0]  %s287, 1536, %s289, [#allocation6], 64, 64, 4
        $region16: #{tpu_custom_call.1} parent=11 // pred_fallthru
          _
        // Predicated region
        $region17: #{tpu_custom_call.1} parent=11 // pred_check
          %p295 = pneg %p93
        $region18: #{tpu_custom_call.1} parent=11 // pred_check_branch
          %297 = sbr.rel (%p295) target = $region20
        $region19: #{tpu_custom_call.1} parent=11 // pred_region
          %299 = vsyncadd [#allocation6], 0
          %s301 = sshll.u32 %s2, 4
          %s302 = int_to_ptr.hbm [resolvable:$true] %s301
          %s303 = sshll.u32 [#allocation7], 4
          %s304 = int_to_ptr.vmem [resolvable:$true] %s303
          %306 = dma.hbm_to_vmem [thread:$0]  %s302, 32, %s304, [#allocation6]
        $region20: #{tpu_custom_call.1} parent=11 // pred_fallthru
          _
        // Predicated region
        $region21: #{tpu_custom_call.1} parent=11 // pred_check
          %p307 = pneg %p114
        $region22: #{tpu_custom_call.1} parent=11 // pred_check_branch
          %309 = sbr.rel (%p307) target = $region24
        $region23: #{tpu_custom_call.1} parent=11 // pred_region
          _
        $region24: #{tpu_custom_call.1} parent=11 // pred_fallthru
          _
        // Predicated region
        $region25: #{tpu_custom_call.1} parent=11 // pred_check
          %p310 = pneg %p135
        $region26: #{tpu_custom_call.1} parent=11 // pred_check_branch
          %312 = sbr.rel (%p310) target = $region28
        $region27: #{tpu_custom_call.1} parent=11 // pred_region
          %314 = vsyncadd [#allocation9], 0
          %s315 = sshll.u32 %s4, 4
          %s316 = int_to_ptr.hbm [resolvable:$true] %s315
          %s317 = sshll.u32 [#allocation8], 4
          %s318 = int_to_ptr.vmem [resolvable:$true] %s317
          %323 = dma.hbm_to_vmem [thread:$0]  %s316, 512, %s318, [#allocation9], 64, 64, 4
        $region28: #{tpu_custom_call.1} parent=11 // pred_fallthru
          _
        // Predicated region
        $region29: #{tpu_custom_call.1} parent=11 // pred_check
          %p324 = pneg %p156
        $region30: #{tpu_custom_call.1} parent=11 // pred_check_branch
          %326 = sbr.rel (%p324) target = $region32
        $region31: #{tpu_custom_call.1} parent=11 // pred_region
          _
        $region32: #{tpu_custom_call.1} parent=11 // pred_fallthru
          _
        // Predicated region
        $region33: #{tpu_custom_call.1} parent=11 // pred_check
          %p327 = pneg %p177
        $region34: #{tpu_custom_call.1} parent=11 // pred_check_branch
          %329 = sbr.rel (%p327) target = $region36
        $region35: #{tpu_custom_call.1} parent=11 // pred_region
          %331 = vsyncadd [#allocation9], 0
          %s332 = sshll.u32 %s6, 4
          %s333 = int_to_ptr.hbm [resolvable:$true] %s332
          %s334 = sshll.u32 [#allocation10], 4
          %s335 = int_to_ptr.vmem [resolvable:$true] %s334
          %340 = dma.hbm_to_vmem [thread:$0]  %s333, 512, %s335, [#allocation9], 64, 64, 4
        $region36: #{tpu_custom_call.1} parent=11 // pred_fallthru
          _
        // Predicated region
        $region37: #{tpu_custom_call.1} parent=11 // pred_check
          %p341 = pneg %p198
        $region38: #{tpu_custom_call.1} parent=11 // pred_check_branch
          %343 = sbr.rel (%p341) target = $region40
        $region39: #{tpu_custom_call.1} parent=11 // pred_region
          _
        $region40: #{tpu_custom_call.1} parent=11 // pred_fallthru
          _
        // Predicated region
        $region41: #{tpu_custom_call.1} parent=11 // pred_check
          %p344 = pneg %p219
        $region42: #{tpu_custom_call.1} parent=11 // pred_check_branch
          %346 = sbr.rel (%p344) target = $region44
        $region43: #{tpu_custom_call.1} parent=11 // pred_region
          %348 = vsyncadd [#allocation12], 0
          %s350 = sshll.u32 %s8, 4
          %s351 = int_to_ptr.hbm [resolvable:$true] %s350
          %s352 = sshll.u32 [#allocation11], 4
          %s353 = int_to_ptr.vmem [resolvable:$true] %s352
          %355 = dma.hbm_to_vmem [thread:$0]  %s351, 32, %s353, [#allocation12]
        $region44: #{tpu_custom_call.1} parent=11 // pred_fallthru
          _
        // Predicated region
        $region45: #{tpu_custom_call.1} parent=11 // pred_check
          %p356 = pneg %p240
        $region46: #{tpu_custom_call.1} parent=11 // pred_check_branch
          %358 = sbr.rel (%p356) target = $region48
        $region47: #{tpu_custom_call.1} parent=11 // pred_region
          _
        $region48: #{tpu_custom_call.1} parent=11 // pred_fallthru
          _
      $region12: #{tpu_custom_call.1} parent=5 // pred_fallthru
        _
      %p359 = scmp.lt.s32.totalorder %s25, 2
      // Predicated region
      $region49: #{tpu_custom_call.1} parent=5 // pred_check
        %p360 = pneg %p359
      $region50: #{tpu_custom_call.1} parent=5 // pred_check_branch
        %362 = sbr.rel (%p360) target = $region52
      $region51: #{tpu_custom_call.1} parent=5 // pred_region
        // Predicated region
        $region53: #{tpu_custom_call.1} parent=51 // pred_check
          %p363 = pneg %p45
        $region54: #{tpu_custom_call.1} parent=51 // pred_check_branch
          %365 = sbr.rel (%p363) target = $region56
        $region55: #{tpu_custom_call.1} parent=51 // pred_region
          %s366 = sand.u32 %s35, 1
          %s367 = scalar_lea.sflag [#allocation3], %s366
          %s368 = sand.u32 %s35, 1
          %s369 = smul.addr %s368, 8
          %s370 = scalar_lea.vmem [#allocation2], %s369
          %372 = vsyncadd %s367, 0
          %s373 = smul.addr %s25, 8
          %s374 = scalar_lea.hbm %s0, %s373
          %s376 = sshll.u32 %s374, 4
          %s377 = int_to_ptr.hbm [resolvable:$true] %s376
          %s378 = sshll.u32 %s370, 4
          %s379 = int_to_ptr.vmem [resolvable:$true] %s378
          %381 = dma.hbm_to_vmem [thread:$0]  %s377, 128, %s379, %s367
        $region56: #{tpu_custom_call.1} parent=51 // pred_fallthru
          _
      $region52: #{tpu_custom_call.1} parent=5 // pred_fallthru
        _
      %p382 = scmp.le.s32.totalorder 1, %s25
      %p383 = scmp.lt.s32.totalorder %s25, 3
      %p384 = pnand %p382, %p383
      %p385 = pneg %p384
      // Predicated region
      $region57: #{tpu_custom_call.1} parent=5 // pred_check
        _
      $region58: #{tpu_custom_call.1} parent=5 // pred_check_branch
        %387 = sbr.rel (%p384) target = $region60
      $region59: #{tpu_custom_call.1} parent=5 // pred_region
        %s388 = ssub.s32 %s25, 1
        %s389 = sand.u32 %s38, 1
        %s390 = scalar_lea.sflag [#allocation3], %s389
        %s391 = sand.u32 %s38, 1
        %s392 = smul.addr %s391, 8
        %s393 = scalar_lea.vmem [#allocation2], %s392
        // Predicated region
        $region61: #{tpu_custom_call.1} parent=59 // pred_check
          %p394 = pneg %p51
        $region62: #{tpu_custom_call.1} parent=59 // pred_check_branch
          %396 = sbr.rel (%p394) target = $region64
        $region63: #{tpu_custom_call.1} parent=59 // pred_region
          %398 = dma.done %s390, 128
        $region64: #{tpu_custom_call.1} parent=59 // pred_fallthru
          _
        // Predicated region
        $region65: #{tpu_custom_call.1} parent=59 // pred_check
          %p399 = pneg %p72
        $region66: #{tpu_custom_call.1} parent=59 // pred_check_branch
          %401 = sbr.rel (%p399) target = $region68
        $region67: #{tpu_custom_call.1} parent=59 // pred_region
          %403 = dma.done [#allocation6], 1536
        $region68: #{tpu_custom_call.1} parent=59 // pred_fallthru
          _
        // Predicated region
        $region69: #{tpu_custom_call.1} parent=59 // pred_check
          %p404 = pneg %p93
        $region70: #{tpu_custom_call.1} parent=59 // pred_check_branch
          %406 = sbr.rel (%p404) target = $region72
        $region71: #{tpu_custom_call.1} parent=59 // pred_region
          %408 = dma.done [#allocation6], 32
        $region72: #{tpu_custom_call.1} parent=59 // pred_fallthru
          _
        // Predicated region
        $region73: #{tpu_custom_call.1} parent=59 // pred_check
          %p409 = pneg %p135
        $region74: #{tpu_custom_call.1} parent=59 // pred_check_branch
          %411 = sbr.rel (%p409) target = $region76
        $region75: #{tpu_custom_call.1} parent=59 // pred_region
          %413 = dma.done [#allocation9], 512
        $region76: #{tpu_custom_call.1} parent=59 // pred_fallthru
          _
        // Predicated region
        $region77: #{tpu_custom_call.1} parent=59 // pred_check
          %p414 = pneg %p177
        $region78: #{tpu_custom_call.1} parent=59 // pred_check_branch
          %416 = sbr.rel (%p414) target = $region80
        $region79: #{tpu_custom_call.1} parent=59 // pred_region
          %418 = dma.done [#allocation9], 512
        $region80: #{tpu_custom_call.1} parent=59 // pred_fallthru
          _
        // Predicated region
        $region81: #{tpu_custom_call.1} parent=59 // pred_check
          %p419 = pneg %p219
        $region82: #{tpu_custom_call.1} parent=59 // pred_check_branch
          %421 = sbr.rel (%p419) target = $region84
        $region83: #{tpu_custom_call.1} parent=59 // pred_region
          %423 = dma.done [#allocation12], 32
        $region84: #{tpu_custom_call.1} parent=59 // pred_fallthru
          _
        %s424 = sand.u32 %s38, 1
        %s425 = scalar_lea.sflag [#allocation3], %s424
        %s426 = sand.u32 %s38, 1
        %s427 = smul.addr %s426, 8
        %s428 = scalar_lea.vmem [#allocation2], %s427
        %p429 = pneg %p51
        %p430 = pneg %p48
        %p431 = pneg %p72
        %p432 = pneg %p69
        %p433 = pneg %p93
        %p434 = pneg %p90
        %p435 = pneg %p114
        %p436 = pneg %p111
        %p437 = pneg %p135
        %p438 = pneg %p132
        %p439 = pneg %p156
        %p440 = pneg %p153
        %p441 = pneg %p177
        %p442 = pneg %p174
        %p443 = pneg %p198
        %p444 = pneg %p195
        %p445 = pneg %p219
        %p446 = pneg %p216
        %p447 = pneg %p240
        %p448 = pneg %p237
        %p449 = pneg %p266
        %p450 = pneg %p263
        %s451 = sand.u32 %s253, 1
        %s452 = scalar_lea.sflag [#allocation4], %s451
        %s453 = sand.u32 %s253, 1
        %s454 = smul.addr %s453, 8
        %s455 = scalar_lea.vmem [#allocation13], %s454
        %v457 = vld [vmem:[%s393] sm:$0xff]
        %v458 = vlaneseq
        %v459 = vshrl.u32 %v458, 7
        %vm460 = vcmp.lt.s32.totalorder %v459, 0
        %v461 = vsub.s32 0, %v459
        %v462 = vsel %vm460, %v461, %v459
        %v463 = vshrl.u32 %v462, 3
        %v464 = vand.u32 %v462, 7
        %v465 = vsub.s32 0, %v464
        %v466 = vsel %vm460, %v465, %v464
        %vm467 = vcmp.ne.s32.totalorder %v466, 0
        %vm468 = vcmp.lt.s32.totalorder %v466, 0
        %vm469 = vmand %vm468, %vm467
        %v470 = vadd.s32 %v466, 8
        %v471 = vsel %vm469, %v470, %v466
        %v472 = vadd.s32 %v471, 4294967295
        %vm473 = vcmp.ge.s32.totalorder %v472, 0
        %vm474 = vcmp.lt.s32.totalorder %v472, 8
        %vm475 = vmand %vm473, %vm474
        %v476 = vadd.s32 %v471, 1
        %vm477 = vcmp.ge.s32.totalorder %v476, 0
        %vm478 = vcmp.lt.s32.totalorder %v476, 8
        %vm479 = vmand %vm477, %vm478
        %v480 = vld [vmem:[#allocation5] sm:$0xf]
        %v481 = vld [vmem:[#allocation5 + $0x4] sm:$0xf]
        %v482 = vld [vmem:[#allocation5 + $0x8] sm:$0xf]
        %v483 = vld [vmem:[#allocation5 + $0xc] sm:$0xf]
        %v484 = vld [vmem:[#allocation5 + $0x10] sm:$0xf]
        %v485 = vld [vmem:[#allocation5 + $0x14] sm:$0xf]
        %v486 = vld [vmem:[#allocation5 + $0x18] sm:$0xf]
        %v487 = vld [vmem:[#allocation5 + $0x1c] sm:$0xf]
        %v488 = vld [vmem:[#allocation5 + $0x20] sm:$0xf]
        %v489 = vld [vmem:[#allocation5 + $0x24] sm:$0xf]
        %v490 = vld [vmem:[#allocation5 + $0x28] sm:$0xf]
        %v491 = vld [vmem:[#allocation5 + $0x2c] sm:$0xf]
        %v492 = vrot.slane %v457, 7
        %v493 = vsel %vm475, 1, 0
        %vm494 = vcmp.eq.s32.totalorder %v493, 1
        %v495 = vsel %vm494, %v492, 0.0
        %v496 = vpack.c.bf16 %v495, %v495
        %v497 = vpack.c.bf16 %v457, %v457
        %v502 = vunpack.c.l.b16 %v484
        %v503 = vunpack.c.l.b16 %v485
        %v504 = vunpack.c.l.b16 %v486
        %v505 = vunpack.c.l.b16 %v487
        %v506 = vpack.c.b16 %v503, %v502
        %v507 = vpack.c.b16 %v505, %v504
        %vm510 = vcmask 261120
        %v512 = vsel %vm510, %v497, 0
        %514 = vmatpush.bf16.msra.mxu0 0
        %515 = vmatpush.bf16.msra.mxu0 0
        %516 = vmatpush.bf16.msra.mxu0 0
        %517 = vmatpush.bf16.msra.mxu0 0
        %518 = vmatpush.bf16.msra.mxu0 0
        %519 = vmatpush.bf16.msra.mxu0 0
        %520 = vmatpush.bf16.msra.mxu0 %v507
        %521 = vmatpush.bf16.msra.mxu0 %v506
        %522 = vmatmul.bf16.gmra.mxu0 %v512
        %v523 = vpop.f32.mrf.mxu0
        %v524 = vadd.f32 0.0, %v523
        %v525 = vpop.f32.mrf.mxu0
        %526 = vdwg.mxu0
        %v531 = vunpack.c.l.b16 %v480
        %v532 = vunpack.c.l.b16 %v481
        %v533 = vunpack.c.l.b16 %v482
        %v534 = vunpack.c.l.b16 %v483
        %v535 = vpack.c.b16 %v532, %v531
        %v536 = vpack.c.b16 %v534, %v533
        %v540 = vsel %vm510, %v496, 0
        %542 = vmatpush.bf16.msra.mxu0 0
        %543 = vmatpush.bf16.msra.mxu0 0
        %544 = vmatpush.bf16.msra.mxu0 0
        %545 = vmatpush.bf16.msra.mxu0 0
        %546 = vmatpush.bf16.msra.mxu0 0
        %547 = vmatpush.bf16.msra.mxu0 0
        %548 = vmatpush.bf16.msra.mxu0 %v536
        %549 = vmatpush.bf16.msra.mxu0 %v535
        %550 = vmatmul.bf16.gmra.mxu0 %v540
        %v551 = vpop.f32.mrf.mxu0
        %v552 = vadd.f32 %v524, %v551
        %v553 = vpop.f32.mrf.mxu0
        %554 = vdwg.mxu0
        %v555 = vrot.slane %v457, 1
        %v556 = vsel %vm479, 1, 0
        %vm557 = vcmp.eq.s32.totalorder %v556, 1
        %v558 = vsel %vm557, %v555, 0.0
        %v559 = vpack.c.bf16 %v558, %v558
        %v564 = vunpack.c.l.b16 %v488
        %v565 = vunpack.c.l.b16 %v489
        %v566 = vunpack.c.l.b16 %v490
        %v567 = vunpack.c.l.b16 %v491
        %v568 = vpack.c.b16 %v565, %v564
        %v569 = vpack.c.b16 %v567, %v566
        %v573 = vsel %vm510, %v559, 0
        %575 = vmatpush.bf16.msra.mxu0 0
        %576 = vmatpush.bf16.msra.mxu0 0
        %577 = vmatpush.bf16.msra.mxu0 0
        %578 = vmatpush.bf16.msra.mxu0 0
        %579 = vmatpush.bf16.msra.mxu0 0
        %580 = vmatpush.bf16.msra.mxu0 0
        %581 = vmatpush.bf16.msra.mxu0 %v569
        %582 = vmatpush.bf16.msra.mxu0 %v568
        %583 = vmatmul.bf16.gmra.mxu0 %v573
        %v584 = vpop.f32.mrf.mxu0
        %v585 = vadd.f32 0.0, %v584
        %v586 = vpop.f32.mrf.mxu0
        %587 = vdwg.mxu0
        %v588 = vadd.f32 %v552, %v585
        %v589 = vxor.u32 %v588, 2147483648
        %v590 = vmul.f32 %v589, 1.442695
        %v591 = vpow.pop %v590
        %v592 = vadd.f32 %v591, 1.0
        %v593 = vrcp.pop %v592
        %v594 = vmul.f32 %v592, %v593
        %v595 = vsub.f32 1.0, %v594
        %v596 = vmul.f32 %v593, %v595
        %v597 = vadd.f32 %v593, %v596
        %vm598 = vweird.f32 %v592
        %vm599 = vweird.f32 %v593
        %vm600 = vmor %vm598, %vm599
        %v601 = vsel %vm600, %v593, %v597
        %v602 = vand.u32 2147483647, %v592
        %vm603 = vcmp.eq.f32.partialorder %v602, 8.507059e+37
        %v604 = vand.u32 %v592, 2147483648
        %v605 = vor.u32 1.1754944e-38, %v604
        %v606 = vsel %vm603, %v605, %v601
        %v607 = vmul.f32 1.0, %v606
        %609 = vrot.lane.b32.xlu0 %v607, 32
        %v610 = vpop.permute.xlu0 %609
        %v612 = vmul.f32 %v588, %v610
        %614 = vrot.lane.b32.xlu0 %v457, 32
        %v615 = vpop.permute.xlu0 %614
        %v617 = vadd.f32 %v612, %v615
        %v618 = vld [vmem:[#allocation7] sm:$0x1]
        %v619 = vld [vmem:[%s3] sm:$0x1]
        %621 = vrot.lane.b32.xlu0 %v617, 96
        %v622 = vpop.permute.xlu0 %621
        %v624 = vsel %vm510, %v622, 0.0
        %625 = vadd.xlane.f32.xlu0 %v624
        %v626 = vpop.xlane.xlu0 %625
        %v627 = vrcp.pop 32.0
        %v628 = vmul.f32 32.0, %v627
        %v629 = vsub.f32 1.0, %v628
        %v630 = vmul.f32 %v627, %v629
        %v631 = vadd.f32 %v627, %v630
        %vm632 = vweird.f32 %v627
        %v633 = vsel %vm632, %v627, %v631
        %v634 = vmul.f32 %v626, %v633
        %v635 = vsub.f32 %v617, %v634
        %v636 = vmul.f32 %v635, %v635
        %638 = vrot.lane.b32.xlu0 %v636, 96
        %v639 = vpop.permute.xlu0 %638
        %v641 = vsel %vm510, %v639, 0.0
        %642 = vadd.xlane.f32.xlu0 %v641
        %v643 = vpop.xlane.xlu0 %642
        %v644 = vmul.f32 %v643, %v633
        %v645 = vadd.f32 %v644, 1e-05
        %v646 = vrsqrt.pop %v645
        %v647 = vmul.f32 %v646, %v645
        %v648 = vmul.f32 %v647, %v646
        %v649 = vmul.f32 0.5, %v648
        %v650 = vsub.f32 1.5, %v649
        %v651 = vmul.f32 %v646, %v650
        %vm652 = vweird.f32 %v645
        %vm653 = vweird.f32 %v646
        %vm654 = vmor %vm652, %vm653
        %v655 = vsel %vm654, %v646, %v651
        %v656 = vmul.f32 %v635, %v655
        %v657 = vperm.slane %v618, 0
        %659 = vrot.lane.b32.xlu0 %v657, 32
        %v660 = vpop.permute.xlu0 %659
        %v662 = vmul.f32 %v656, %v660
        %v663 = vperm.slane %v619, 0
        %665 = vrot.lane.b32.xlu0 %v663, 32
        %v666 = vpop.permute.xlu0 %665
        %v668 = vadd.f32 %v662, %v666
        %v669 = vpack.c.bf16 %v668, %v668
        %v670 = vld [vmem:[#allocation8] sm:$0xf]
        %v671 = vld [vmem:[#allocation8 + $0x4] sm:$0xf]
        %v672 = vld [vmem:[#allocation8 + $0x8] sm:$0xf]
        %v673 = vld [vmem:[#allocation8 + $0xc] sm:$0xf]
        %v674 = vld [vmem:[%s5] sm:$0x1]
        %v675 = vperm.slane %v674, 0
        %677 = vrot.lane.b32.xlu0 %v669, 96
        %v678 = vpop.permute.xlu0 %677
        %v683 = vunpack.c.l.b16 %v670
        %v684 = vunpack.c.l.b16 %v671
        %v685 = vunpack.c.l.b16 %v672
        %v686 = vunpack.c.l.b16 %v673
        %v687 = vpack.c.b16 %v684, %v683
        %v688 = vpack.c.b16 %v686, %v685
        %v692 = vsel %vm510, %v678, 0
        %694 = vmatpush.bf16.msra.mxu0 0
        %695 = vmatpush.bf16.msra.mxu0 0
        %696 = vmatpush.bf16.msra.mxu0 0
        %697 = vmatpush.bf16.msra.mxu0 0
        %698 = vmatpush.bf16.msra.mxu0 0
        %699 = vmatpush.bf16.msra.mxu0 0
        %700 = vmatpush.bf16.msra.mxu0 %v688
        %701 = vmatpush.bf16.msra.mxu0 %v687
        %702 = vmatmul.bf16.gmra.mxu0 %v692
        %v703 = vpop.f32.mrf.mxu0
        %v704 = vadd.f32 %v675, %v703
        %v705 = vpop.f32.mrf.mxu0
        %706 = vdwg.mxu0
        %v707 = vmax.f32 %v704, 0.0
        %v708 = vpack.c.bf16 %v707, %v707
        %v709 = vld [vmem:[#allocation10] sm:$0xf]
        %v710 = vld [vmem:[#allocation10 + $0x4] sm:$0xf]
        %v711 = vld [vmem:[#allocation10 + $0x8] sm:$0xf]
        %v712 = vld [vmem:[#allocation10 + $0xc] sm:$0xf]
        %v713 = vld [vmem:[%s7] sm:$0x1]
        %v714 = vperm.slane %v713, 0
        %v719 = vunpack.c.l.b16 %v709
        %v720 = vunpack.c.l.b16 %v710
        %v721 = vunpack.c.l.b16 %v711
        %v722 = vunpack.c.l.b16 %v712
        %v723 = vpack.c.b16 %v720, %v719
        %v724 = vpack.c.b16 %v722, %v721
        %v728 = vsel %vm510, %v708, 0
        %730 = vmatpush.bf16.msra.mxu0 0
        %731 = vmatpush.bf16.msra.mxu0 0
        %732 = vmatpush.bf16.msra.mxu0 0
        %733 = vmatpush.bf16.msra.mxu0 0
        %734 = vmatpush.bf16.msra.mxu0 0
        %735 = vmatpush.bf16.msra.mxu0 0
        %736 = vmatpush.bf16.msra.mxu0 %v724
        %737 = vmatpush.bf16.msra.mxu0 %v723
        %738 = vmatmul.bf16.gmra.mxu0 %v728
        %v739 = vpop.f32.mrf.mxu0
        %v740 = vadd.f32 %v714, %v739
        %v741 = vpop.f32.mrf.mxu0
        %742 = vdwg.mxu0
        %744 = vrot.lane.b32.xlu0 %v740, 32
        %v745 = vpop.permute.xlu0 %744
        %v747 = vadd.f32 %v668, %v745
        %v748 = vld [vmem:[#allocation11] sm:$0x1]
        %v749 = vld [vmem:[%s9] sm:$0x1]
        %751 = vrot.lane.b32.xlu0 %v747, 96
        %v752 = vpop.permute.xlu0 %751
        %v754 = vsel %vm510, %v752, 0.0
        %755 = vadd.xlane.f32.xlu0 %v754
        %v756 = vpop.xlane.xlu0 %755
        %v757 = vmul.f32 %v756, %v633
        %v758 = vsub.f32 %v747, %v757
        %v759 = vmul.f32 %v758, %v758
        %761 = vrot.lane.b32.xlu0 %v759, 96
        %v762 = vpop.permute.xlu0 %761
        %v764 = vsel %vm510, %v762, 0.0
        %765 = vadd.xlane.f32.xlu0 %v764
        %v766 = vpop.xlane.xlu0 %765
        %v767 = vmul.f32 %v766, %v633
        %v768 = vadd.f32 %v767, 1e-05
        %v769 = vrsqrt.pop %v768
        %v770 = vmul.f32 %v769, %v768
        %v771 = vmul.f32 %v770, %v769
        %v772 = vmul.f32 0.5, %v771
        %v773 = vsub.f32 1.5, %v772
        %v774 = vmul.f32 %v769, %v773
        %vm775 = vweird.f32 %v768
        %vm776 = vweird.f32 %v769
        %vm777 = vmor %vm775, %vm776
        %v778 = vsel %vm777, %v769, %v774
        %v779 = vmul.f32 %v758, %v778
        %v780 = vperm.slane %v748, 0
        %782 = vrot.lane.b32.xlu0 %v780, 32
        %v783 = vpop.permute.xlu0 %782
        %v785 = vmul.f32 %v779, %v783
        %v786 = vperm.slane %v749, 0
        %788 = vrot.lane.b32.xlu0 %v786, 32
        %v789 = vpop.permute.xlu0 %788
        %v791 = vadd.f32 %v785, %v789
        %s792 = scalar_lea.vmem [#allocation5], 48
        %v793 = vld [vmem:[%s792] sm:$0xf]
        %v794 = vld [vmem:[%s792 + $0x4] sm:$0xf]
        %v795 = vld [vmem:[%s792 + $0x8] sm:$0xf]
        %v796 = vld [vmem:[%s792 + $0xc] sm:$0xf]
        %v797 = vld [vmem:[%s792 + $0x10] sm:$0xf]
        %v798 = vld [vmem:[%s792 + $0x14] sm:$0xf]
        %v799 = vld [vmem:[%s792 + $0x18] sm:$0xf]
        %v800 = vld [vmem:[%s792 + $0x1c] sm:$0xf]
        %v801 = vld [vmem:[%s792 + $0x20] sm:$0xf]
        %v802 = vld [vmem:[%s792 + $0x24] sm:$0xf]
        %v803 = vld [vmem:[%s792 + $0x28] sm:$0xf]
        %v804 = vld [vmem:[%s792 + $0x2c] sm:$0xf]
        %806 = vrot.lane.b32.xlu0 %v791, 96
        %v807 = vpop.permute.xlu0 %806
        %v809 = vrot.slane %v807, 7
        %v810 = vsel %vm494, %v809, 0.0
        %v811 = vpack.c.bf16 %v810, %v810
        %v812 = vpack.c.bf16 %v791, %v791
        %814 = vrot.lane.b32.xlu0 %v812, 96
        %v815 = vpop.permute.xlu0 %814
        %v820 = vunpack.c.l.b16 %v797
        %v821 = vunpack.c.l.b16 %v798
        %v822 = vunpack.c.l.b16 %v799
        %v823 = vunpack.c.l.b16 %v800
        %v824 = vpack.c.b16 %v821, %v820
        %v825 = vpack.c.b16 %v823, %v822
        %v829 = vsel %vm510, %v815, 0
        %831 = vmatpush.bf16.msra.mxu0 0
        %832 = vmatpush.bf16.msra.mxu0 0
        %833 = vmatpush.bf16.msra.mxu0 0
        %834 = vmatpush.bf16.msra.mxu0 0
        %835 = vmatpush.bf16.msra.mxu0 0
        %836 = vmatpush.bf16.msra.mxu0 0
        %837 = vmatpush.bf16.msra.mxu0 %v825
        %838 = vmatpush.bf16.msra.mxu0 %v824
        %839 = vmatmul.bf16.gmra.mxu0 %v829
        %v840 = vpop.f32.mrf.mxu0
        %v841 = vadd.f32 0.0, %v840
        %v842 = vpop.f32.mrf.mxu0
        %843 = vdwg.mxu0
        %v848 = vunpack.c.l.b16 %v793
        %v849 = vunpack.c.l.b16 %v794
        %v850 = vunpack.c.l.b16 %v795
        %v851 = vunpack.c.l.b16 %v796
        %v852 = vpack.c.b16 %v849, %v848
        %v853 = vpack.c.b16 %v851, %v850
        %v857 = vsel %vm510, %v811, 0
        %859 = vmatpush.bf16.msra.mxu0 0
        %860 = vmatpush.bf16.msra.mxu0 0
        %861 = vmatpush.bf16.msra.mxu0 0
        %862 = vmatpush.bf16.msra.mxu0 0
        %863 = vmatpush.bf16.msra.mxu0 0
        %864 = vmatpush.bf16.msra.mxu0 0
        %865 = vmatpush.bf16.msra.mxu0 %v853
        %866 = vmatpush.bf16.msra.mxu0 %v852
        %867 = vmatmul.bf16.gmra.mxu0 %v857
        %v868 = vpop.f32.mrf.mxu0
        %v869 = vadd.f32 %v841, %v868
        %v870 = vpop.f32.mrf.mxu0
        %871 = vdwg.mxu0
        %v872 = vrot.slane %v807, 1
        %v873 = vsel %vm557, %v872, 0.0
        %v874 = vpack.c.bf16 %v873, %v873
        %v879 = vunpack.c.l.b16 %v801
        %v880 = vunpack.c.l.b16 %v802
        %v881 = vunpack.c.l.b16 %v803
        %v882 = vunpack.c.l.b16 %v804
        %v883 = vpack.c.b16 %v880, %v879
        %v884 = vpack.c.b16 %v882, %v881
        %v888 = vsel %vm510, %v874, 0
        %890 = vmatpush.bf16.msra.mxu0 0
        %891 = vmatpush.bf16.msra.mxu0 0
        %892 = vmatpush.bf16.msra.mxu0 0
        %893 = vmatpush.bf16.msra.mxu0 0
        %894 = vmatpush.bf16.msra.mxu0 0
        %895 = vmatpush.bf16.msra.mxu0 0
        %896 = vmatpush.bf16.msra.mxu0 %v884
        %897 = vmatpush.bf16.msra.mxu0 %v883
        %898 = vmatmul.bf16.gmra.mxu0 %v888
        %v899 = vpop.f32.mrf.mxu0
        %v900 = vadd.f32 0.0, %v899
        %v901 = vpop.f32.mrf.mxu0
        %902 = vdwg.mxu0
        %v903 = vadd.f32 %v869, %v900
        %v904 = vxor.u32 %v903, 2147483648
        %v905 = vmul.f32 %v904, 1.442695
        %v906 = vpow.pop %v905
        %v907 = vadd.f32 %v906, 1.0
        %v908 = vrcp.pop %v907
        %v909 = vmul.f32 %v907, %v908
        %v910 = vsub.f32 1.0, %v909
        %v911 = vmul.f32 %v908, %v910
        %v912 = vadd.f32 %v908, %v911
        %vm913 = vweird.f32 %v907
        %vm914 = vweird.f32 %v908
        %vm915 = vmor %vm913, %vm914
        %v916 = vsel %vm915, %v908, %v912
        %v917 = vand.u32 2147483647, %v907
        %vm918 = vcmp.eq.f32.partialorder %v917, 8.507059e+37
        %v919 = vand.u32 %v907, 2147483648
        %v920 = vor.u32 1.1754944e-38, %v919
        %v921 = vsel %vm918, %v920, %v916
        %v922 = vmul.f32 1.0, %v921
        %924 = vrot.lane.b32.xlu0 %v922, 32
        %v925 = vpop.permute.xlu0 %924
        %v927 = vmul.f32 %v903, %v925
        %v928 = vadd.f32 %v927, %v791
        %v929 = vld [vmem:[#allocation7 + $0x1] sm:$0x1]
        %v930 = vld [vmem:[%s3 + $0x1] sm:$0x1]
        %932 = vrot.lane.b32.xlu0 %v928, 96
        %v933 = vpop.permute.xlu0 %932
        %v935 = vsel %vm510, %v933, 0.0
        %936 = vadd.xlane.f32.xlu0 %v935
        %v937 = vpop.xlane.xlu0 %936
        %v938 = vmul.f32 %v937, %v633
        %v939 = vsub.f32 %v928, %v938
        %v940 = vmul.f32 %v939, %v939
        %942 = vrot.lane.b32.xlu0 %v940, 96
        %v943 = vpop.permute.xlu0 %942
        %v945 = vsel %vm510, %v943, 0.0
        %946 = vadd.xlane.f32.xlu0 %v945
        %v947 = vpop.xlane.xlu0 %946
        %v948 = vmul.f32 %v947, %v633
        %v949 = vadd.f32 %v948, 1e-05
        %v950 = vrsqrt.pop %v949
        %v951 = vmul.f32 %v950, %v949
        %v952 = vmul.f32 %v951, %v950
        %v953 = vmul.f32 0.5, %v952
        %v954 = vsub.f32 1.5, %v953
        %v955 = vmul.f32 %v950, %v954
        %vm956 = vweird.f32 %v949
        %vm957 = vweird.f32 %v950
        %vm958 = vmor %vm956, %vm957
        %v959 = vsel %vm958, %v950, %v955
        %v960 = vmul.f32 %v939, %v959
        %v961 = vperm.slane %v929, 0
        %963 = vrot.lane.b32.xlu0 %v961, 32
        %v964 = vpop.permute.xlu0 %963
        %v966 = vmul.f32 %v960, %v964
        %v967 = vperm.slane %v930, 0
        %969 = vrot.lane.b32.xlu0 %v967, 32
        %v970 = vpop.permute.xlu0 %969
        %v972 = vadd.f32 %v966, %v970
        %v973 = vpack.c.bf16 %v972, %v972
        %s974 = scalar_lea.vmem [#allocation8], 16
        %v975 = vld [vmem:[%s974] sm:$0xf]
        %v976 = vld [vmem:[%s974 + $0x4] sm:$0xf]
        %v977 = vld [vmem:[%s974 + $0x8] sm:$0xf]
        %v978 = vld [vmem:[%s974 + $0xc] sm:$0xf]
        %v979 = vld [vmem:[%s5 + $0x1] sm:$0x1]
        %v980 = vperm.slane %v979, 0
        %982 = vrot.lane.b32.xlu0 %v973, 96
        %v983 = vpop.permute.xlu0 %982
        %v988 = vunpack.c.l.b16 %v975
        %v989 = vunpack.c.l.b16 %v976
        %v990 = vunpack.c.l.b16 %v977
        %v991 = vunpack.c.l.b16 %v978
        %v992 = vpack.c.b16 %v989, %v988
        %v993 = vpack.c.b16 %v991, %v990
        %v997 = vsel %vm510, %v983, 0
        %999 = vmatpush.bf16.msra.mxu0 0
        %1000 = vmatpush.bf16.msra.mxu0 0
        %1001 = vmatpush.bf16.msra.mxu0 0
        %1002 = vmatpush.bf16.msra.mxu0 0
        %1003 = vmatpush.bf16.msra.mxu0 0
        %1004 = vmatpush.bf16.msra.mxu0 0
        %1005 = vmatpush.bf16.msra.mxu0 %v993
        %1006 = vmatpush.bf16.msra.mxu0 %v992
        %1007 = vmatmul.bf16.gmra.mxu0 %v997
        %v1008 = vpop.f32.mrf.mxu0
        %v1009 = vadd.f32 %v980, %v1008
        %v1010 = vpop.f32.mrf.mxu0
        %1011 = vdwg.mxu0
        %v1012 = vmax.f32 %v1009, 0.0
        %v1013 = vpack.c.bf16 %v1012, %v1012
        %s1014 = scalar_lea.vmem [#allocation10], 16
        %v1015 = vld [vmem:[%s1014] sm:$0xf]
        %v1016 = vld [vmem:[%s1014 + $0x4] sm:$0xf]
        %v1017 = vld [vmem:[%s1014 + $0x8] sm:$0xf]
        %v1018 = vld [vmem:[%s1014 + $0xc] sm:$0xf]
        %v1019 = vld [vmem:[%s7 + $0x1] sm:$0x1]
        %v1020 = vperm.slane %v1019, 0
        %v1025 = vunpack.c.l.b16 %v1015
        %v1026 = vunpack.c.l.b16 %v1016
        %v1027 = vunpack.c.l.b16 %v1017
        %v1028 = vunpack.c.l.b16 %v1018
        %v1029 = vpack.c.b16 %v1026, %v1025
        %v1030 = vpack.c.b16 %v1028, %v1027
        %v1034 = vsel %vm510, %v1013, 0
        %1036 = vmatpush.bf16.msra.mxu0 0
        %1037 = vmatpush.bf16.msra.mxu0 0
        %1038 = vmatpush.bf16.msra.mxu0 0
        %1039 = vmatpush.bf16.msra.mxu0 0
        %1040 = vmatpush.bf16.msra.mxu0 0
        %1041 = vmatpush.bf16.msra.mxu0 0
        %1042 = vmatpush.bf16.msra.mxu0 %v1030
        %1043 = vmatpush.bf16.msra.mxu0 %v1029
        %1044 = vmatmul.bf16.gmra.mxu0 %v1034
        %v1045 = vpop.f32.mrf.mxu0
        %v1046 = vadd.f32 %v1020, %v1045
        %v1047 = vpop.f32.mrf.mxu0
        %1048 = vdwg.mxu0
        %1050 = vrot.lane.b32.xlu0 %v1046, 32
        %v1051 = vpop.permute.xlu0 %1050
        %v1053 = vadd.f32 %v972, %v1051
        %v1054 = vld [vmem:[#allocation11 + $0x1] sm:$0x1]
        %v1055 = vld [vmem:[%s9 + $0x1] sm:$0x1]
        %1057 = vrot.lane.b32.xlu0 %v1053, 96
        %v1058 = vpop.permute.xlu0 %1057
        %v1060 = vsel %vm510, %v1058, 0.0
        %1061 = vadd.xlane.f32.xlu0 %v1060
        %v1062 = vpop.xlane.xlu0 %1061
        %v1063 = vmul.f32 %v1062, %v633
        %v1064 = vsub.f32 %v1053, %v1063
        %v1065 = vmul.f32 %v1064, %v1064
        %1067 = vrot.lane.b32.xlu0 %v1065, 96
        %v1068 = vpop.permute.xlu0 %1067
        %v1070 = vsel %vm510, %v1068, 0.0
        %1071 = vadd.xlane.f32.xlu0 %v1070
        %v1072 = vpop.xlane.xlu0 %1071
        %v1073 = vmul.f32 %v1072, %v633
        %v1074 = vadd.f32 %v1073, 1e-05
        %v1075 = vrsqrt.pop %v1074
        %v1076 = vmul.f32 %v1075, %v1074
        %v1077 = vmul.f32 %v1076, %v1075
        %v1078 = vmul.f32 0.5, %v1077
        %v1079 = vsub.f32 1.5, %v1078
        %v1080 = vmul.f32 %v1075, %v1079
        %vm1081 = vweird.f32 %v1074
        %vm1082 = vweird.f32 %v1075
        %vm1083 = vmor %vm1081, %vm1082
        %v1084 = vsel %vm1083, %v1075, %v1080
        %v1085 = vmul.f32 %v1064, %v1084
        %v1086 = vperm.slane %v1054, 0
        %1088 = vrot.lane.b32.xlu0 %v1086, 32
        %v1089 = vpop.permute.xlu0 %1088
        %v1091 = vmul.f32 %v1085, %v1089
        %v1092 = vperm.slane %v1055, 0
        %1094 = vrot.lane.b32.xlu0 %v1092, 32
        %v1095 = vpop.permute.xlu0 %1094
        %v1097 = vadd.f32 %v1091, %v1095
        %1099 = vrot.lane.b32.xlu0 %v1097, 96
        %v1100 = vpop.permute.xlu0 %1099
        %1102 = vst.msk [vmem:[%s455] sm:$0xff] %vm510, %v1100
        %s1103 = sand.u32 %s253, 1
        %s1104 = scalar_lea.sflag [#allocation4], %s1103
        %s1105 = sand.u32 %s253, 1
        %s1106 = smul.addr %s1105, 8
        %s1107 = scalar_lea.vmem [#allocation13], %s1106
        // Predicated region
        $region85: #{tpu_custom_call.1} parent=59 // pred_check
          %p1108 = pneg %p263
        $region86: #{tpu_custom_call.1} parent=59 // pred_check_branch
          %1110 = sbr.rel (%p1108) target = $region88
        $region87: #{tpu_custom_call.1} parent=59 // pred_region
          %1112 = vsyncadd %s1104, 0
          %s1113 = smul.addr %s30, 8
          %s1114 = scalar_lea.hbm %s10, %s1113
          %s1116 = sshll.u32 %s1107, 4
          %s1117 = int_to_ptr.vmem [resolvable:$true] %s1116
          %s1118 = sshll.u32 %s1114, 4
          %s1119 = int_to_ptr.hbm [resolvable:$true] %s1118
          %1121 = dma.vmem_to_hbm [thread:$0]  %s1117, 128, %s1119, %s1104
        $region88: #{tpu_custom_call.1} parent=59 // pred_fallthru
          _
      $region60: #{tpu_custom_call.1} parent=5 // pred_fallthru
        _
      %p1122 = scmp.le.s32.totalorder 2, %s25
      // Predicated region
      $region89: #{tpu_custom_call.1} parent=5 // pred_check
        %p1123 = pneg %p1122
      $region90: #{tpu_custom_call.1} parent=5 // pred_check_branch
        %1125 = sbr.rel (%p1123) target = $region92
      $region91: #{tpu_custom_call.1} parent=5 // pred_region
        %s1126 = ssub.s32 %s25, 2
        // Predicated region
        $region93: #{tpu_custom_call.1} parent=91 // pred_check
          %p1127 = pneg %p269
        $region94: #{tpu_custom_call.1} parent=91 // pred_check_branch
          %1129 = sbr.rel (%p1127) target = $region96
        $region95: #{tpu_custom_call.1} parent=91 // pred_region
          %s1130 = sand.u32 %s254, 1
          %s1131 = scalar_lea.sflag [#allocation4], %s1130
          %s1132 = sand.u32 %s254, 1
          %s1133 = smul.addr %s1132, 8
          %s1134 = scalar_lea.vmem [#allocation13], %s1133
          %1136 = dma.done %s1131, 128
        $region96: #{tpu_custom_call.1} parent=91 // pred_fallthru
          _
      $region92: #{tpu_custom_call.1} parent=5 // pred_fallthru
        _
    $region6: #{tpu_custom_call.1} parent=1 // loop_footer
      %s29 = sadd.s32 1, %s25
    $region7: #{tpu_custom_call.1} parent=1 // loop_footer_branch
      %24 = sbr.rel target = $region3
    $region8: #{tpu_custom_call.1} parent=1 // loop_exit
      _
    %1137 = vsyncpa [#allocation3], 1
    %s1138 = scalar_lea.sflag [#allocation3], 1
    %1139 = vsyncpa %s1138, 1
    %1140 = vsyncpa [#allocation6], 1
    %1141 = vsyncpa [#allocation9], 1
    %1142 = vsyncpa [#allocation12], 1
    %1143 = vsyncpa [#allocation4], 1
    %s1144 = scalar_lea.sflag [#allocation4], 1
    %1145 = vsyncpa %s1144, 1

</llo_original>
